<compile_context>
chip_gen: v6e
topology: v6e:2x2x1
jax: 0.10.0
libtpu: 0.0.40
codegen_flags: <defaults>
</compile_context>

<pallas_src>
import functools

import jax
import jax.numpy as jnp
from jax import lax
from jax.experimental import pallas as pl
from jax.experimental.pallas import tpu as pltpu


# ----------------------------------------------------------------------------- prefill kernel
def _prefill_kernel(num_heads, head_dim,
                    x_ref, wqkv_ref, wo_ref, bo_ref,
                    out_ref, kc_ref, vc_ref, attn_ref):
    E = num_heads * head_dim
    T = x_ref.shape[1]
    L = kc_ref.shape[1]

    # fused QKV projection: one bf16 MXU pass (3x wider N), f32 accumulation
    qkv = jnp.dot(x_ref[0], wqkv_ref[...], preferred_element_type=jnp.float32)   # (T, 3E)
    q = qkv[:, 0:E]
    k = qkv[:, E:2 * E]
    v = qkv[:, 2 * E:3 * E]

    # lane-dense KV-cache write: rows [0:T] in one contiguous store; padding rows are
    # zeroed only to reproduce the torch module's returned cache (decode masks by n).
    kc_ref[0, 0:T, :] = k.astype(kc_ref.dtype)
    vc_ref[0, 0:T, :] = v.astype(vc_ref.dtype)
    kc_ref[0, T:L, :] = jnp.zeros((L - T, E), kc_ref.dtype)
    vc_ref[0, T:L, :] = jnp.zeros((L - T, E), vc_ref.dtype)

    # causal mask (same -1e38 convention as the torch module, no 1/sqrt(d) scaling)
    row = lax.broadcasted_iota(jnp.int32, (T, T), 0)
    col = lax.broadcasted_iota(jnp.int32, (T, T), 1)
    causal = col <= row

    # per-head attention; each head's output lands directly in its (T, E) columns
    # (no stack / no concatenate), only one (T, T) score block live at a time.
    for h in range(num_heads):
        sl = slice(h * head_dim, (h + 1) * head_dim)
        qh = q[:, sl].astype(jnp.bfloat16)
        kh = k[:, sl].astype(jnp.bfloat16)
        vh = v[:, sl].astype(jnp.bfloat16)
        s = jnp.einsum('td,sd->ts', qh, kh, preferred_element_type=jnp.float32)   # (T, T)
        s = jnp.where(causal, s, jnp.float32(-1e38))
        m = jnp.max(s, axis=-1, keepdims=True)
        e = jnp.exp(s - m)
        p = e * pl.reciprocal(jnp.sum(e, axis=-1, keepdims=True), approx=True)
        o = jnp.dot(p.astype(jnp.bfloat16), vh, preferred_element_type=jnp.float32)
        attn_ref[:, sl] = o.astype(attn_ref.dtype)

    out_ref[0] = (jnp.dot(attn_ref[...], wo_ref[...], preferred_element_type=jnp.float32)
                  + bo_ref[...]).astype(out_ref.dtype)


def mha_prefill(x, wqkv_t, wo_t, bo2, num_heads, buffer_len):
    """x: (B,T,E) f32. wqkv_t: (E,3E) bf16, wo_t: (E,E) bf16, bo2: (1,E) f32."""
    B, T, E = x.shape
    head_dim = E // num_heads
    L = T + buffer_len
    kernel = functools.partial(_prefill_kernel, num_heads, head_dim)
    return pl.pallas_call(
        kernel,
        grid=(B,),   # kept only for megacore parallelism over the batch
        in_specs=[
            pl.BlockSpec((1, T, E), lambda b: (b, 0, 0)),
            pl.BlockSpec((E, 3 * E), lambda b: (0, 0)),
            pl.BlockSpec((E, E), lambda b: (0, 0)),
            pl.BlockSpec((1, E), lambda b: (0, 0)),
        ],
        out_specs=(
            pl.BlockSpec((1, T, E), lambda b: (b, 0, 0)),
            pl.BlockSpec((1, L, E), lambda b: (b, 0, 0)),
            pl.BlockSpec((1, L, E), lambda b: (b, 0, 0)),
        ),
        out_shape=(
            jax.ShapeDtypeStruct((B, T, E), jnp.float32),
            jax.ShapeDtypeStruct((B, L, E), jnp.bfloat16),
            jax.ShapeDtypeStruct((B, L, E), jnp.bfloat16),
        ),
        scratch_shapes=[pltpu.VMEM((T, E), jnp.bfloat16)],   # merged attention output
        compiler_params=pltpu.CompilerParams(
            dimension_semantics=("parallel",),
            vmem_limit_bytes=48 * 1024 * 1024),
    )(x.astype(jnp.bfloat16), wqkv_t, wo_t, bo2)


# ----------------------------------------------------------------------------- decode kernel
def _decode_kernel(num_heads, head_dim,
                   n_ref, x_ref, wqkv_ref, wo_ref, bo_ref, kc_in_ref, vc_in_ref,
                   out_ref, kc_out_ref, vc_out_ref,
                   kbuf, vbuf, knew_ref, vnew_ref, m_ref, l_ref, acc_ref, rsem, wsem):
    E = num_heads * head_dim
    H = num_heads
    B = x_ref.shape[0]
    C = kbuf.shape[2]
    n = n_ref[0]
    n_chunks = (n + C - 1) // C                 # chunks covering live cache rows [0, n)

    def fetch(c, slot):
        start = c * C
        pltpu.make_async_copy(kc_in_ref.at[:, pl.ds(start, C), :], kbuf.at[slot],
                              rsem.at[0, slot]).start()
        pltpu.make_async_copy(vc_in_ref.at[:, pl.ds(start, C), :], vbuf.at[slot],
                              rsem.at[1, slot]).start()

    # 1) kick off the first chunk read; it overlaps the QKV projection below.
    @pl.when(n_chunks > 0)
    def _():
        fetch(0, 0)

    # 2) fused QKV projection for the whole (B, E) decode slab (bf16 MXU, f32 acc).
    qkv = jnp.dot(x_ref[...], wqkv_ref[...], preferred_element_type=jnp.float32)  # (B, 3E)
    q = qkv[:, 0:E]
    k_new = qkv[:, E:2 * E]
    v_new = qkv[:, 2 * E:3 * E]

    # 3) stage the new K/V row and push it to the aliased HBM cache immediately
    #    (decoupled from the chunked reads -> off the critical path; B contiguous rows).
    knew_ref[:, 0, :] = k_new.astype(knew_ref.dtype)
    vnew_ref[:, 0, :] = v_new.astype(vnew_ref.dtype)
    k_wr = pltpu.make_async_copy(knew_ref, kc_out_ref.at[:, pl.ds(n, 1), :], wsem.at[0])
    v_wr = pltpu.make_async_copy(vnew_ref, vc_out_ref.at[:, pl.ds(n, 1), :], wsem.at[1])
    k_wr.start()
    v_wr.start()

    # segment matrices: seg[e, h] = 1 iff lane e belongs to head h (and its transpose);
    # built with iota + compare (no integer division needed).
    e_i = lax.broadcasted_iota(jnp.int32, (E, H), 0)
    h_i = lax.broadcasted_iota(jnp.int32, (E, H), 1)
    seg = ((e_i >= h_i * head_dim) & (e_i < (h_i + 1) * head_dim)).astype(jnp.float32)
    h_j = lax.broadcasted_iota(jnp.int32, (H, E), 0)
    e_j = lax.broadcasted_iota(jnp.int32, (H, E), 1)
    segT = ((e_j >= h_j * head_dim) & (e_j < (h_j + 1) * head_dim)).astype(jnp.float32)

    # 4) online-softmax state initialized with the new token itself (position n),
    #    so the (still in-flight) cache row n is never read back.
    m_ref[...] = jnp.dot(q * k_new, seg, preferred_element_type=jnp.float32)    # (B, H)
    l_ref[...] = jnp.ones((B, H), jnp.float32)
    acc_ref[...] = v_new                                                         # (B, E)

    neg = jnp.float32(-1e38)

    # 5) chunked, double-buffered pass over the live prefix [0, n).
    @pl.loop(0, n_chunks)
    def _(c):
        slot = c & 1
        pltpu.make_async_copy(kc_in_ref.at[:, pl.ds(0, C), :], kbuf.at[slot],
                              rsem.at[0, slot]).wait()
        pltpu.make_async_copy(vc_in_ref.at[:, pl.ds(0, C), :], vbuf.at[slot],
                              rsem.at[1, slot]).wait()

        @pl.when(c + 1 < n_chunks)
        def _():
            fetch(c + 1, 1 - slot)

        pos = c * C + lax.broadcasted_iota(jnp.int32, (C, H), 0)               # (C, H)
        k_slot = kbuf[slot]                                                     # (B, C, E)
        v_slot = vbuf[slot]
        for b in range(B):
            k_c = k_slot[b].astype(jnp.float32)                                 # (C, E)
            v_c = v_slot[b].astype(jnp.float32)
            # all heads at once: elementwise multiply + segmented lane reduce (skinny matmul)
            s = jnp.dot(k_c * q[b:b + 1, :], seg,
                        preferred_element_type=jnp.float32)                     # (C, H)
            s = jnp.where(pos < n, s, neg)
            m_prev = m_ref[b:b + 1, :]                                          # (1, H)
            m_new = jnp.maximum(m_prev, jnp.max(s, axis=0, keepdims=True))
            alpha = jnp.exp(m_prev - m_new)                                     # (1, H)
            p = jnp.exp(s - m_new)                                              # (C, H)
            l_ref[b:b + 1, :] = alpha * l_ref[b:b + 1, :] + jnp.sum(p, axis=0, keepdims=True)
            p_exp = jnp.dot(p, segT, preferred_element_type=jnp.float32)        # (C, E)
            a_exp = jnp.dot(alpha, segT, preferred_element_type=jnp.float32)    # (1, E)
            acc_ref[b:b + 1, :] = (a_exp * acc_ref[b:b + 1, :]
                                   + jnp.sum(p_exp * v_c, axis=0, keepdims=True))
            m_ref[b:b + 1, :] = m_new

    # 6) normalize, heads are already merged (lane-dense), output projection.
    l_exp = jnp.dot(l_ref[...], segT, preferred_element_type=jnp.float32)       # (B, E)
    attn = acc_ref[...] * pl.reciprocal(l_exp, approx=True)
    out_ref[...] = (jnp.dot(attn.astype(jnp.bfloat16), wo_ref[...],
                            preferred_element_type=jnp.float32)
                    + bo_ref[...]).astype(out_ref.dtype)

    k_wr.wait()
    v_wr.wait()


def mha_decode(x, k_cache, v_cache, n, wqkv_t, wo_t, bo2, num_heads):
    """x: (B,1,E) new token. Caches are lane-dense (B,L,E) bf16, updated IN PLACE."""
    B, T, E = x.shape
    assert T == 1, "decode kernel handles a single new token, like the torch KVCache usage"
    head_dim = E // num_heads
    L = k_cache.shape[1]
    # chunk length for the prefix read: multiple of 8, divides L, bounded for VMEM.
    chunk = next((c for c in (512, 256, 128, 64, 32, 16, 8) if L % c == 0), L)
    kernel = functools.partial(_decode_kernel, num_heads, head_dim)
    vmem = pltpu.MemorySpace.VMEM
    out2d, kc, vc = pl.pallas_call(
        kernel,
        in_specs=[
            pl.BlockSpec(memory_space=pltpu.MemorySpace.SMEM),   # n
            pl.BlockSpec(memory_space=vmem),                     # x slab (B, E)
            pl.BlockSpec(memory_space=vmem),                     # wqkv (E, 3E)
            pl.BlockSpec(memory_space=vmem),                     # wo   (E, E)
            pl.BlockSpec(memory_space=vmem),                     # bias (1, E)
            pl.BlockSpec(memory_space=pl.ANY),                   # k_cache (HBM, in place)
            pl.BlockSpec(memory_space=pl.ANY),                   # v_cache (HBM, in place)
        ],
        out_specs=(
            pl.BlockSpec(memory_space=vmem),                     # out (B, E)
            pl.BlockSpec(memory_space=pl.ANY),                   # k_cache (aliased)
            pl.BlockSpec(memory_space=pl.ANY),                   # v_cache (aliased)
        ),
        out_shape=(
            jax.ShapeDtypeStruct((B, E), jnp.float32),
            jax.ShapeDtypeStruct(k_cache.shape, k_cache.dtype),
            jax.ShapeDtypeStruct(v_cache.shape, v_cache.dtype),
        ),
        scratch_shapes=[
            pltpu.VMEM((2, B, chunk, E), k_cache.dtype),   # K chunk double buffer
            pltpu.VMEM((2, B, chunk, E), v_cache.dtype),   # V chunk double buffer
            pltpu.VMEM((B, 1, E), k_cache.dtype),          # staged new K row
            pltpu.VMEM((B, 1, E), v_cache.dtype),          # staged new V row
            pltpu.VMEM((B, num_heads), jnp.float32),       # running max
            pltpu.VMEM((B, num_heads), jnp.float32),       # running denom
            pltpu.VMEM((B, E), jnp.float32),               # running weighted V
            pltpu.SemaphoreType.DMA((2, 2)),               # chunk-read sems (k/v x slot)
            pltpu.SemaphoreType.DMA((2,)),                 # new-row write-back sems
        ],
        input_output_aliases={5: 1, 6: 2},
        compiler_params=pltpu.CompilerParams(vmem_limit_bytes=48 * 1024 * 1024),
    )(jnp.array([n], dtype=jnp.int32), x.reshape(B, E).astype(jnp.bfloat16),
      wqkv_t, wo_t, bo2, k_cache, v_cache)
    return out2d.reshape(B, 1, E), kc, vc


# ----------------------------------------------------------------------------- pure-JAX reference
def _split_heads(a, num_heads):
    B, T, E = a.shape
    return a.reshape(B, T, num_heads, E // num_heads).transpose(0, 2, 1, 3)


def ref_prefill(x, wq, wk, wv, wo, bo, num_heads, buffer_len):
    B, T, E = x.shape
    q = _split_heads(x @ wq.T, num_heads)
    k = _split_heads(x @ wk.T, num_heads)
    v = _split_heads(x @ wv.T, num_heads)
    row = jnp.arange(T)[:, None]
    col = jnp.arange(T)[None, :]
    mask = jnp.where(col > row, -1e38, 0.0).astype(jnp.float32)
    scores = jnp.einsum("bhqd,bhkd->bhqk", q, k) + mask
    probs = jax.nn.softmax(scores, axis=-1)
    attn = jnp.einsum("bhqk,bhkd->bhqd", probs, v)
    out = attn.transpose(0, 2, 1, 3).reshape(B, T, E) @ wo.T + bo
    zeros = jnp.zeros((B, num_heads, buffer_len, E // num_heads), jnp.float32)
    return out, jnp.concatenate([k, zeros], axis=2), jnp.concatenate([v, zeros], axis=2)


def ref_decode(x, k_cache, v_cache, n, wq, wk, wv, wo, bo, num_heads):
    B, T, E = x.shape
    q = _split_heads(x @ wq.T, num_heads)
    k = _split_heads(x @ wk.T, num_heads)
    v = _split_heads(x @ wv.T, num_heads)
    k_cache = k_cache.at[:, :, n, :].set(k[:, :, 0, :])
    v_cache = v_cache.at[:, :, n, :].set(v[:, :, 0, :])
    cmp_k = k_cache[:, :, : n + 1, :]
    cmp_v = v_cache[:, :, : n + 1, :]
    scores = jnp.einsum("bhqd,bhkd->bhqk", q, cmp_k)
    probs = jax.nn.softmax(scores, axis=-1)
    attn = jnp.einsum("bhqk,bhkd->bhqd", probs, cmp_v)
    out = attn.transpose(0, 2, 1, 3).reshape(B, T, E) @ wo.T + bo
    return out, k_cache, v_cache


# ----------------------------------------------------------------------------- main
if __name__ == "__main__":
    B, T, E, H = 2, 8, 32, 4          # batch, seq, n_embd, num_heads (head_dim = 8)
    BUFFER = 16                        # max_seq_len argument of the module

    key = jax.random.PRNGKey(0)
    kx, kq_, kk_, kv_, ko_, kb_, kd_ = jax.random.split(key, 7)
    x = jax.random.normal(kx, (B, T, E), dtype=jnp.float32)
    wq = 0.05 * jax.random.normal(kq_, (E, E), dtype=jnp.float32)   # nn.Linear weight (out, in)
    wk = 0.05 * jax.random.normal(kk_, (E, E), dtype=jnp.float32)
    wv = 0.05 * jax.random.normal(kv_, (E, E), dtype=jnp.float32)
    wo = 0.05 * jax.random.normal(ko_, (E, E), dtype=jnp.float32)
    bo = 0.05 * jax.random.normal(kb_, (E,), dtype=jnp.float32)

    # one-time "model load" weight prep (outside the hot path): fuse QKV, pre-transpose
    # to (in, out) layout, cast to bf16 for the MXU.
    wqkv_t = jnp.concatenate([wq, wk, wv], axis=0).T.astype(jnp.bfloat16)   # (E, 3E)
    wo_t = wo.T.astype(jnp.bfloat16)                                        # (E, E)
    bo2 = bo.reshape(1, E)                                                  # f32
    jax.block_until_ready((wqkv_t, wo_t, bo2))

    def cache_to_bhld(c):   # lane-dense (B, L, E) -> torch layout (B, H, L, Dh)
        Bc, Lc, Ec = c.shape
        return c.astype(jnp.float32).reshape(Bc, Lc, H, Ec // H).transpose(0, 2, 1, 3)

    TOL = dict(rtol=4e-2, atol=4e-2)   # bf16 weights/activations/cache vs f32 reference

    # --- prefill branch (k_cache is None) ---
    out, k_cache, v_cache = mha_prefill(x, wqkv_t, wo_t, bo2, H, BUFFER)
    jax.block_until_ready((out, k_cache, v_cache))
    r_out, r_kc, r_vc = ref_prefill(x, wq, wk, wv, wo, bo, H, BUFFER)
    assert jnp.allclose(out, r_out, **TOL)
    assert jnp.allclose(cache_to_bhld(k_cache), r_kc, **TOL)
    assert jnp.allclose(cache_to_bhld(v_cache), r_vc, **TOL)

    # --- decode branch (write new token at position n = T, attend over [0, n]) ---
    x_new = jax.random.normal(kd_, (B, 1, E), dtype=jnp.float32)
    n = T
    out2, k_cache2, v_cache2 = mha_decode(x_new, k_cache, v_cache, n,
                                          wqkv_t, wo_t, bo2, H)
    jax.block_until_ready((out2, k_cache2, v_cache2))
    r_out2, r_kc2, r_vc2 = ref_decode(x_new, r_kc, r_vc, n, wq, wk, wv, wo, bo, H)
    assert jnp.allclose(out2, r_out2, **TOL)
    assert jnp.allclose(cache_to_bhld(k_cache2), r_kc2, **TOL)
    assert jnp.allclose(cache_to_bhld(v_cache2), r_vc2, **TOL)

    print("KERNEL_OK")
</pallas_src>

<mosaic_0001>
module attributes {stable_mosaic.version = 11 : i64} {
  func.func @_prefill_kernel(%arg0: i32, %arg1: memref<1x8x32xbf16, #tpu.memory_space<vmem>>, %arg2: memref<32x96xbf16, #tpu.memory_space<vmem>>, %arg3: memref<32x32xbf16, #tpu.memory_space<vmem>>, %arg4: memref<1x32xf32, #tpu.memory_space<vmem>>, %arg5: memref<1x8x32xf32, #tpu.memory_space<vmem>>, %arg6: memref<1x24x32xbf16, #tpu.memory_space<vmem>>, %arg7: memref<1x24x32xbf16, #tpu.memory_space<vmem>>, %arg8: memref<8x32xbf16, #tpu.memory_space<vmem>>) attributes {dimension_semantics = [#tpu.dimension_semantics<parallel>], iteration_bounds = array<i64: 2>, scalar_prefetch = 0 : i64, scratch_operands = 1 : i64, tpu.core_type = #tpu.core_type<tc>, window_params = [{transform_indices = @transform_0, window_bounds = array<i64: 1, 8, 32>}, {pipeline_mode = #tpu.pipeline_mode<synchronous>, transform_indices = @transform_1, window_bounds = array<i64: 32, 96>}, {pipeline_mode = #tpu.pipeline_mode<synchronous>, transform_indices = @transform_2, window_bounds = array<i64: 32, 32>}, {pipeline_mode = #tpu.pipeline_mode<synchronous>, transform_indices = @transform_3, window_bounds = array<i64: 1, 32>}, {transform_indices = @transform_4, window_bounds = array<i64: 1, 8, 32>}, {transform_indices = @transform_5, window_bounds = array<i64: 1, 24, 32>}, {transform_indices = @transform_6, window_bounds = array<i64: 1, 24, 32>}]} {
    %c0 = arith.constant 0 : index
    %c0_0 = arith.constant 0 : index
    %c0_1 = arith.constant 0 : index
    %0 = vector.load %arg1[%c0, %c0_0, %c0_1] : memref<1x8x32xbf16, #tpu.memory_space<vmem>>, vector<1x8x32xbf16>
    %1 = vector.shape_cast %0 : vector<1x8x32xbf16> to vector<8x32xbf16>
    %c0_2 = arith.constant 0 : index
    %c0_3 = arith.constant 0 : index
    %2 = vector.load %arg2[%c0_2, %c0_3] : memref<32x96xbf16, #tpu.memory_space<vmem>>, vector<32x96xbf16>
    %cst = arith.constant dense<0.000000e+00> : vector<8x96xf32>
    %3 = tpu.matmul %1, %2, %cst {dimension_numbers = #tpu.dot_dimension_numbers<[1], [0], [0], [1], [0, 0, 1, 1], [], []>} : vector<8x32xbf16>, vector<32x96xbf16>, vector<8x96xf32> -> vector<8x96xf32>
    %4 = vector.extract_strided_slice %3 {offsets = [0, 0], sizes = [8, 32], strides = [1, 1]} : vector<8x96xf32> to vector<8x32xf32>
    %5 = vector.extract_strided_slice %3 {offsets = [0, 32], sizes = [8, 32], strides = [1, 1]} : vector<8x96xf32> to vector<8x32xf32>
    %6 = vector.extract_strided_slice %3 {offsets = [0, 64], sizes = [8, 32], strides = [1, 1]} : vector<8x96xf32> to vector<8x32xf32>
    %7 = arith.truncf %5 : vector<8x32xf32> to vector<8x32xbf16>
    %c0_4 = arith.constant 0 : index
    %c0_5 = arith.constant 0 : index
    %c0_6 = arith.constant 0 : index
    %8 = vector.load %arg6[%c0_4, %c0_5, %c0_6] : memref<1x24x32xbf16, #tpu.memory_space<vmem>>, vector<1x8x32xbf16>
    %9 = vector.shape_cast %8 : vector<1x8x32xbf16> to vector<8x32xbf16>
    %10 = vector.shape_cast %7 : vector<8x32xbf16> to vector<1x8x32xbf16>
    tpu.vector_store %arg6[%c0_4, %c0_5, %c0_6], %10 {strides = array<i32>} : memref<1x24x32xbf16, #tpu.memory_space<vmem>>, vector<1x8x32xbf16>,
    %11 = arith.truncf %6 : vector<8x32xf32> to vector<8x32xbf16>
    %c0_7 = arith.constant 0 : index
    %c0_8 = arith.constant 0 : index
    %c0_9 = arith.constant 0 : index
    %12 = vector.load %arg7[%c0_7, %c0_8, %c0_9] : memref<1x24x32xbf16, #tpu.memory_space<vmem>>, vector<1x8x32xbf16>
    %13 = vector.shape_cast %12 : vector<1x8x32xbf16> to vector<8x32xbf16>
    %14 = vector.shape_cast %11 : vector<8x32xbf16> to vector<1x8x32xbf16>
    tpu.vector_store %arg7[%c0_7, %c0_8, %c0_9], %14 {strides = array<i32>} : memref<1x24x32xbf16, #tpu.memory_space<vmem>>, vector<1x8x32xbf16>,
    %cst_10 = arith.constant 0.000000e+00 : bf16
    %15 = vector.broadcast %cst_10 : bf16 to vector<16x32xbf16>
    %c0_11 = arith.constant 0 : index
    %c8 = arith.constant 8 : index
    %c0_12 = arith.constant 0 : index
    %16 = vector.load %arg6[%c0_11, %c8, %c0_12] : memref<1x24x32xbf16, #tpu.memory_space<vmem>>, vector<1x16x32xbf16>
    %17 = vector.shape_cast %16 : vector<1x16x32xbf16> to vector<16x32xbf16>
    %18 = vector.shape_cast %15 : vector<16x32xbf16> to vector<1x16x32xbf16>
    tpu.vector_store %arg6[%c0_11, %c8, %c0_12], %18 {strides = array<i32>} : memref<1x24x32xbf16, #tpu.memory_space<vmem>>, vector<1x16x32xbf16>,
    %cst_13 = arith.constant 0.000000e+00 : bf16
    %19 = vector.broadcast %cst_13 : bf16 to vector<16x32xbf16>
    %c0_14 = arith.constant 0 : index
    %c8_15 = arith.constant 8 : index
    %c0_16 = arith.constant 0 : index
    %20 = vector.load %arg7[%c0_14, %c8_15, %c0_16] : memref<1x24x32xbf16, #tpu.memory_space<vmem>>, vector<1x16x32xbf16>
    %21 = vector.shape_cast %20 : vector<1x16x32xbf16> to vector<16x32xbf16>
    %22 = vector.shape_cast %19 : vector<16x32xbf16> to vector<1x16x32xbf16>
    tpu.vector_store %arg7[%c0_14, %c8_15, %c0_16], %22 {strides = array<i32>} : memref<1x24x32xbf16, #tpu.memory_space<vmem>>, vector<1x16x32xbf16>,
    %23 = tpu.iota {dimensions = array<i32: 0>} : vector<8x8xi32>
    %24 = tpu.iota {dimensions = array<i32: 1>} : vector<8x8xi32>
    %25 = arith.cmpi sle, %24, %23 : vector<8x8xi32>
    %26 = vector.extract_strided_slice %4 {offsets = [0, 0], sizes = [8, 8], strides = [1, 1]} : vector<8x32xf32> to vector<8x8xf32>
    %27 = arith.truncf %26 : vector<8x8xf32> to vector<8x8xbf16>
    %28 = vector.extract_strided_slice %5 {offsets = [0, 0], sizes = [8, 8], strides = [1, 1]} : vector<8x32xf32> to vector<8x8xf32>
    %29 = arith.truncf %28 : vector<8x8xf32> to vector<8x8xbf16>
    %30 = vector.extract_strided_slice %6 {offsets = [0, 0], sizes = [8, 8], strides = [1, 1]} : vector<8x32xf32> to vector<8x8xf32>
    %31 = arith.truncf %30 : vector<8x8xf32> to vector<8x8xbf16>
    "tpu.trace_start"() <{level = 10 : i32, message = "td,sd->ts"}> : () -> ()
    %cst_17 = arith.constant dense<0.000000e+00> : vector<8x8xf32>
    %32 = tpu.matmul %27, %29, %cst_17 {dimension_numbers = #tpu.dot_dimension_numbers<[1], [1], [0], [0], [0, 0, 1, 0], [], []>} : vector<8x8xbf16>, vector<8x8xbf16>, vector<8x8xf32> -> vector<8x8xf32>
    %cst_18 = arith.constant -9.99999968E+37 : f32
    "tpu.trace_stop"() : () -> ()
    %33 = vector.broadcast %cst_18 : f32 to vector<8x8xf32>
    %34 = arith.select %25, %32, %33 : vector<8x8xi1>, vector<8x8xf32>
    %cst_19 = arith.constant dense<0xFF800000> : vector<8xf32>
    %35 = vector.multi_reduction <maximumf>, %34, %cst_19 [1] : vector<8x8xf32> to vector<8xf32>
    %36 = vector.shape_cast %35 : vector<8xf32> to vector<8x1xf32>
    %37 = vector.broadcast %36 : vector<8x1xf32> to vector<8x8xf32>
    %38 = arith.subf %34, %37 : vector<8x8xf32>
    %39 = math.exp %38 : vector<8x8xf32>
    %cst_20 = arith.constant dense<0.000000e+00> : vector<8xf32>
    %40 = vector.multi_reduction <add>, %39, %cst_20 [1] : vector<8x8xf32> to vector<8xf32>
    %41 = vector.shape_cast %40 : vector<8xf32> to vector<8x1xf32>
    %42 = tpu.reciprocal %41 {approx = true} : vector<8x1xf32> -> vector<8x1xf32>
    %43 = vector.broadcast %42 : vector<8x1xf32> to vector<8x8xf32>
    %44 = arith.mulf %39, %43 : vector<8x8xf32>
    %45 = arith.truncf %44 : vector<8x8xf32> to vector<8x8xbf16>
    %cst_21 = arith.constant dense<0.000000e+00> : vector<8x8xf32>
    %46 = tpu.matmul %45, %31, %cst_21 {dimension_numbers = #tpu.dot_dimension_numbers<[1], [0], [0], [1], [0, 0, 1, 1], [], []>} : vector<8x8xbf16>, vector<8x8xbf16>, vector<8x8xf32> -> vector<8x8xf32>
    %47 = arith.truncf %46 : vector<8x8xf32> to vector<8x8xbf16>
    %c0_22 = arith.constant 0 : index
    %c0_23 = arith.constant 0 : index
    %48 = vector.load %arg8[%c0_22, %c0_23] : memref<8x32xbf16, #tpu.memory_space<vmem>>, vector<8x8xbf16>
    tpu.vector_store %arg8[%c0_22, %c0_23], %47 {strides = array<i32>} : memref<8x32xbf16, #tpu.memory_space<vmem>>, vector<8x8xbf16>,
    %49 = vector.extract_strided_slice %4 {offsets = [0, 8], sizes = [8, 8], strides = [1, 1]} : vector<8x32xf32> to vector<8x8xf32>
    %50 = arith.truncf %49 : vector<8x8xf32> to vector<8x8xbf16>
    %51 = vector.extract_strided_slice %5 {offsets = [0, 8], sizes = [8, 8], strides = [1, 1]} : vector<8x32xf32> to vector<8x8xf32>
    %52 = arith.truncf %51 : vector<8x8xf32> to vector<8x8xbf16>
    %53 = vector.extract_strided_slice %6 {offsets = [0, 8], sizes = [8, 8], strides = [1, 1]} : vector<8x32xf32> to vector<8x8xf32>
    %54 = arith.truncf %53 : vector<8x8xf32> to vector<8x8xbf16>
    "tpu.trace_start"() <{level = 10 : i32, message = "td,sd->ts"}> : () -> ()
    %cst_24 = arith.constant dense<0.000000e+00> : vector<8x8xf32>
    %55 = tpu.matmul %50, %52, %cst_24 {dimension_numbers = #tpu.dot_dimension_numbers<[1], [1], [0], [0], [0, 0, 1, 0], [], []>} : vector<8x8xbf16>, vector<8x8xbf16>, vector<8x8xf32> -> vector<8x8xf32>
    %cst_25 = arith.constant -9.99999968E+37 : f32
    "tpu.trace_stop"() : () -> ()
    %56 = vector.broadcast %cst_25 : f32 to vector<8x8xf32>
    %57 = arith.select %25, %55, %56 : vector<8x8xi1>, vector<8x8xf32>
    %cst_26 = arith.constant dense<0xFF800000> : vector<8xf32>
    %58 = vector.multi_reduction <maximumf>, %57, %cst_26 [1] : vector<8x8xf32> to vector<8xf32>
    %59 = vector.shape_cast %58 : vector<8xf32> to vector<8x1xf32>
    %60 = vector.broadcast %59 : vector<8x1xf32> to vector<8x8xf32>
    %61 = arith.subf %57, %60 : vector<8x8xf32>
    %62 = math.exp %61 : vector<8x8xf32>
    %cst_27 = arith.constant dense<0.000000e+00> : vector<8xf32>
    %63 = vector.multi_reduction <add>, %62, %cst_27 [1] : vector<8x8xf32> to vector<8xf32>
    %64 = vector.shape_cast %63 : vector<8xf32> to vector<8x1xf32>
    %65 = tpu.reciprocal %64 {approx = true} : vector<8x1xf32> -> vector<8x1xf32>
    %66 = vector.broadcast %65 : vector<8x1xf32> to vector<8x8xf32>
    %67 = arith.mulf %62, %66 : vector<8x8xf32>
    %68 = arith.truncf %67 : vector<8x8xf32> to vector<8x8xbf16>
    %cst_28 = arith.constant dense<0.000000e+00> : vector<8x8xf32>
    %69 = tpu.matmul %68, %54, %cst_28 {dimension_numbers = #tpu.dot_dimension_numbers<[1], [0], [0], [1], [0, 0, 1, 1], [], []>} : vector<8x8xbf16>, vector<8x8xbf16>, vector<8x8xf32> -> vector<8x8xf32>
    %70 = arith.truncf %69 : vector<8x8xf32> to vector<8x8xbf16>
    %c0_29 = arith.constant 0 : index
    %c8_30 = arith.constant 8 : index
    %71 = vector.load %arg8[%c0_29, %c8_30] : memref<8x32xbf16, #tpu.memory_space<vmem>>, vector<8x8xbf16>
    tpu.vector_store %arg8[%c0_29, %c8_30], %70 {strides = array<i32>} : memref<8x32xbf16, #tpu.memory_space<vmem>>, vector<8x8xbf16>,
    %72 = vector.extract_strided_slice %4 {offsets = [0, 16], sizes = [8, 8], strides = [1, 1]} : vector<8x32xf32> to vector<8x8xf32>
    %73 = arith.truncf %72 : vector<8x8xf32> to vector<8x8xbf16>
    %74 = vector.extract_strided_slice %5 {offsets = [0, 16], sizes = [8, 8], strides = [1, 1]} : vector<8x32xf32> to vector<8x8xf32>
    %75 = arith.truncf %74 : vector<8x8xf32> to vector<8x8xbf16>
    %76 = vector.extract_strided_slice %6 {offsets = [0, 16], sizes = [8, 8], strides = [1, 1]} : vector<8x32xf32> to vector<8x8xf32>
    %77 = arith.truncf %76 : vector<8x8xf32> to vector<8x8xbf16>
    "tpu.trace_start"() <{level = 10 : i32, message = "td,sd->ts"}> : () -> ()
    %cst_31 = arith.constant dense<0.000000e+00> : vector<8x8xf32>
    %78 = tpu.matmul %73, %75, %cst_31 {dimension_numbers = #tpu.dot_dimension_numbers<[1], [1], [0], [0], [0, 0, 1, 0], [], []>} : vector<8x8xbf16>, vector<8x8xbf16>, vector<8x8xf32> -> vector<8x8xf32>
    %cst_32 = arith.constant -9.99999968E+37 : f32
    "tpu.trace_stop"() : () -> ()
    %79 = vector.broadcast %cst_32 : f32 to vector<8x8xf32>
    %80 = arith.select %25, %78, %79 : vector<8x8xi1>, vector<8x8xf32>
    %cst_33 = arith.constant dense<0xFF800000> : vector<8xf32>
    %81 = vector.multi_reduction <maximumf>, %80, %cst_33 [1] : vector<8x8xf32> to vector<8xf32>
    %82 = vector.shape_cast %81 : vector<8xf32> to vector<8x1xf32>
    %83 = vector.broadcast %82 : vector<8x1xf32> to vector<8x8xf32>
    %84 = arith.subf %80, %83 : vector<8x8xf32>
    %85 = math.exp %84 : vector<8x8xf32>
    %cst_34 = arith.constant dense<0.000000e+00> : vector<8xf32>
    %86 = vector.multi_reduction <add>, %85, %cst_34 [1] : vector<8x8xf32> to vector<8xf32>
    %87 = vector.shape_cast %86 : vector<8xf32> to vector<8x1xf32>
    %88 = tpu.reciprocal %87 {approx = true} : vector<8x1xf32> -> vector<8x1xf32>
    %89 = vector.broadcast %88 : vector<8x1xf32> to vector<8x8xf32>
    %90 = arith.mulf %85, %89 : vector<8x8xf32>
    %91 = arith.truncf %90 : vector<8x8xf32> to vector<8x8xbf16>
    %cst_35 = arith.constant dense<0.000000e+00> : vector<8x8xf32>
    %92 = tpu.matmul %91, %77, %cst_35 {dimension_numbers = #tpu.dot_dimension_numbers<[1], [0], [0], [1], [0, 0, 1, 1], [], []>} : vector<8x8xbf16>, vector<8x8xbf16>, vector<8x8xf32> -> vector<8x8xf32>
    %93 = arith.truncf %92 : vector<8x8xf32> to vector<8x8xbf16>
    %c0_36 = arith.constant 0 : index
    %c16 = arith.constant 16 : index
    %94 = vector.load %arg8[%c0_36, %c16] : memref<8x32xbf16, #tpu.memory_space<vmem>>, vector<8x8xbf16>
    tpu.vector_store %arg8[%c0_36, %c16], %93 {strides = array<i32>} : memref<8x32xbf16, #tpu.memory_space<vmem>>, vector<8x8xbf16>,
    %95 = vector.extract_strided_slice %4 {offsets = [0, 24], sizes = [8, 8], strides = [1, 1]} : vector<8x32xf32> to vector<8x8xf32>
    %96 = arith.truncf %95 : vector<8x8xf32> to vector<8x8xbf16>
    %97 = vector.extract_strided_slice %5 {offsets = [0, 24], sizes = [8, 8], strides = [1, 1]} : vector<8x32xf32> to vector<8x8xf32>
    %98 = arith.truncf %97 : vector<8x8xf32> to vector<8x8xbf16>
    %99 = vector.extract_strided_slice %6 {offsets = [0, 24], sizes = [8, 8], strides = [1, 1]} : vector<8x32xf32> to vector<8x8xf32>
    %100 = arith.truncf %99 : vector<8x8xf32> to vector<8x8xbf16>
    "tpu.trace_start"() <{level = 10 : i32, message = "td,sd->ts"}> : () -> ()
    %cst_37 = arith.constant dense<0.000000e+00> : vector<8x8xf32>
    %101 = tpu.matmul %96, %98, %cst_37 {dimension_numbers = #tpu.dot_dimension_numbers<[1], [1], [0], [0], [0, 0, 1, 0], [], []>} : vector<8x8xbf16>, vector<8x8xbf16>, vector<8x8xf32> -> vector<8x8xf32>
    %cst_38 = arith.constant -9.99999968E+37 : f32
    "tpu.trace_stop"() : () -> ()
    %102 = vector.broadcast %cst_38 : f32 to vector<8x8xf32>
    %103 = arith.select %25, %101, %102 : vector<8x8xi1>, vector<8x8xf32>
    %cst_39 = arith.constant dense<0xFF800000> : vector<8xf32>
    %104 = vector.multi_reduction <maximumf>, %103, %cst_39 [1] : vector<8x8xf32> to vector<8xf32>
    %105 = vector.shape_cast %104 : vector<8xf32> to vector<8x1xf32>
    %106 = vector.broadcast %105 : vector<8x1xf32> to vector<8x8xf32>
    %107 = arith.subf %103, %106 : vector<8x8xf32>
    %108 = math.exp %107 : vector<8x8xf32>
    %cst_40 = arith.constant dense<0.000000e+00> : vector<8xf32>
    %109 = vector.multi_reduction <add>, %108, %cst_40 [1] : vector<8x8xf32> to vector<8xf32>
    %110 = vector.shape_cast %109 : vector<8xf32> to vector<8x1xf32>
    %111 = tpu.reciprocal %110 {approx = true} : vector<8x1xf32> -> vector<8x1xf32>
    %112 = vector.broadcast %111 : vector<8x1xf32> to vector<8x8xf32>
    %113 = arith.mulf %108, %112 : vector<8x8xf32>
    %114 = arith.truncf %113 : vector<8x8xf32> to vector<8x8xbf16>
    %cst_41 = arith.constant dense<0.000000e+00> : vector<8x8xf32>
    %115 = tpu.matmul %114, %100, %cst_41 {dimension_numbers = #tpu.dot_dimension_numbers<[1], [0], [0], [1], [0, 0, 1, 1], [], []>} : vector<8x8xbf16>, vector<8x8xbf16>, vector<8x8xf32> -> vector<8x8xf32>
    %116 = arith.truncf %115 : vector<8x8xf32> to vector<8x8xbf16>
    %c0_42 = arith.constant 0 : index
    %c24 = arith.constant 24 : index
    %117 = vector.load %arg8[%c0_42, %c24] : memref<8x32xbf16, #tpu.memory_space<vmem>>, vector<8x8xbf16>
    tpu.vector_store %arg8[%c0_42, %c24], %116 {strides = array<i32>} : memref<8x32xbf16, #tpu.memory_space<vmem>>, vector<8x8xbf16>,
    %c0_43 = arith.constant 0 : index
    %c0_44 = arith.constant 0 : index
    %118 = vector.load %arg8[%c0_43, %c0_44] : memref<8x32xbf16, #tpu.memory_space<vmem>>, vector<8x32xbf16>
    %c0_45 = arith.constant 0 : index
    %c0_46 = arith.constant 0 : index
    %119 = vector.load %arg3[%c0_45, %c0_46] : memref<32x32xbf16, #tpu.memory_space<vmem>>, vector<32x32xbf16>
    %cst_47 = arith.constant dense<0.000000e+00> : vector<8x32xf32>
    %120 = tpu.matmul %118, %119, %cst_47 {dimension_numbers = #tpu.dot_dimension_numbers<[1], [0], [0], [1], [0, 0, 1, 1], [], []>} : vector<8x32xbf16>, vector<32x32xbf16>, vector<8x32xf32> -> vector<8x32xf32>
    %c0_48 = arith.constant 0 : index
    %c0_49 = arith.constant 0 : index
    %121 = vector.load %arg4[%c0_48, %c0_49] : memref<1x32xf32, #tpu.memory_space<vmem>>, vector<1x32xf32>
    %122 = vector.broadcast %121 : vector<1x32xf32> to vector<8x32xf32>
    %123 = arith.addf %120, %122 : vector<8x32xf32>
    %c0_50 = arith.constant 0 : index
    %c0_51 = arith.constant 0 : index
    %c0_52 = arith.constant 0 : index
    %124 = vector.load %arg5[%c0_50, %c0_51, %c0_52] : memref<1x8x32xf32, #tpu.memory_space<vmem>>, vector<1x8x32xf32>
    %125 = vector.shape_cast %124 : vector<1x8x32xf32> to vector<8x32xf32>
    %126 = vector.shape_cast %123 : vector<8x32xf32> to vector<1x8x32xf32>
    tpu.vector_store %arg5[%c0_50, %c0_51, %c0_52], %126 {strides = array<i32>} : memref<1x8x32xf32, #tpu.memory_space<vmem>>, vector<1x8x32xf32>,
    return
  }
  func.func @transform_0(%arg0: i32) -> (i32, i32, i32) {
    %c0_i32 = arith.constant 0 : i32
    %c0_i32_0 = arith.constant 0 : i32
    %c0_i32_1 = arith.constant 0 : i32
    return %arg0, %c0_i32, %c0_i32_0 : i32, i32, i32
  }
  func.func @transform_1(%arg0: i32) -> (i32, i32) {
    %c0_i32 = arith.constant 0 : i32
    %c0_i32_0 = arith.constant 0 : i32
    %c0_i32_1 = arith.constant 0 : i32
    return %c0_i32, %c0_i32_0 : i32, i32
  }
  func.func @transform_2(%arg0: i32) -> (i32, i32) {
    %c0_i32 = arith.constant 0 : i32
    %c0_i32_0 = arith.constant 0 : i32
    %c0_i32_1 = arith.constant 0 : i32
    return %c0_i32, %c0_i32_0 : i32, i32
  }
  func.func @transform_3(%arg0: i32) -> (i32, i32) {
    %c0_i32 = arith.constant 0 : i32
    %c0_i32_0 = arith.constant 0 : i32
    %c0_i32_1 = arith.constant 0 : i32
    return %c0_i32, %c0_i32_0 : i32, i32
  }
  func.func @transform_4(%arg0: i32) -> (i32, i32, i32) {
    %c0_i32 = arith.constant 0 : i32
    %c0_i32_0 = arith.constant 0 : i32
    %c0_i32_1 = arith.constant 0 : i32
    return %arg0, %c0_i32, %c0_i32_0 : i32, i32, i32
  }
  func.func @transform_5(%arg0: i32) -> (i32, i32, i32) {
    %c0_i32 = arith.constant 0 : i32
    %c0_i32_0 = arith.constant 0 : i32
    %c0_i32_1 = arith.constant 0 : i32
    return %arg0, %c0_i32, %c0_i32_0 : i32, i32, i32
  }
  func.func @transform_6(%arg0: i32) -> (i32, i32, i32) {
    %c0_i32 = arith.constant 0 : i32
    %c0_i32_0 = arith.constant 0 : i32
    %c0_i32_1 = arith.constant 0 : i32
    return %arg0, %c0_i32, %c0_i32_0 : i32, i32, i32
  }
}

</mosaic_0001>

<llo_original>
// kernel: tpu_custom_call.1
$region0: #{tpu_custom_call.1}
  #allocation0 [shape = 'u32[]', space=smem, size = 0x4, offset = 0x4, fixed_abs, tag = 'smem constant byte address 0x4 - core index']
  #allocation1 [shape = 'u32[144,128]{1,0:T(1,128)}', space=vmem, size = 0x12000, scoped, tag = 'internal scratch']
  #allocation2 [shape = 'bf16[8,32]{1,0:T(8,128)(2,1)}', space=vmem, size = 0x800, scoped, tag = 'scratch operand']
  %s0 = inlined_call_operand.hbm [shape: bf16[2,8,32], index: 0, kind: input, shape index: {}]
  %s1 = inlined_call_operand.hbm [shape: bf16[32,96], index: 1, kind: input, shape index: {}]
  %s2 = inlined_call_operand.hbm [shape: bf16[32,32], index: 2, kind: input, shape index: {}]
  %s3 = inlined_call_operand.vmem [shape: f32[1,32], index: 3, kind: input, shape index: {}]
  %s4 = inlined_call_operand.hbm [shape: f32[2,8,32], index: 4, kind: output, shape index: {0}]
  %s5 = inlined_call_operand.hbm [shape: bf16[2,24,32], index: 5, kind: output, shape index: {1}]
  %s6 = inlined_call_operand.hbm [shape: bf16[2,24,32], index: 6, kind: output, shape index: {2}]
  %7 = xla_tuple %s4, %s5, %s6
  %s8 = sld [smem:[#allocation0]]
  $region77: #{tpu_custom_call.1} parent=0
    _
  %s10 = ssub.s32 1, %s8
  %s11 = scalar_select 0, %s10, %s8
  $region1: #{tpu_custom_call.1} parent=0
    #allocation3 [shape = 'u8[4096]{0}', space=vmem, size = 0x1000, scoped, tag = 'input window, operand 0']
    #allocation4 [shape = 's32[2]{0}', space=sflag, size = 0x8, scoped, tag = 'scoped memory for tpu_custom_call.1']
    #allocation5 [shape = 's32[2]{0}', space=sflag, size = 0x8, scoped, tag = 'scoped memory for tpu_custom_call.1']
    #allocation6 [shape = 'u8[8192]{0}', space=vmem, size = 0x2000, scoped, tag = 'input window, operand 1, single buffered']
    #allocation7 [shape = 's32[1]{0}', space=sflag, size = 0x4, scoped, tag = 'scoped memory for tpu_custom_call.1']
    #allocation8 [shape = 'u8[8192]{0}', space=vmem, size = 0x2000, scoped, tag = 'input window, operand 2, single buffered']
    #allocation9 [shape = 'u8[8192]{0}', space=vmem, size = 0x2000, scoped, tag = 'output window, operand 0']
    #allocation10 [shape = 'u8[12288]{0}', space=vmem, size = 0x3000, scoped, tag = 'output window, operand 1']
    #allocation11 [shape = 's32[2]{0}', space=sflag, size = 0x8, scoped, tag = 'scoped memory for tpu_custom_call.1']
    #allocation12 [shape = 'u8[12288]{0}', space=vmem, size = 0x3000, scoped, tag = 'output window, operand 2']
    %12 = vsyncpa [#allocation4], 0
    %s13 = scalar_lea.sflag [#allocation4], 1
    %14 = vsyncpa %s13, 0
    %15 = vsyncpa [#allocation7], 0
    %16 = vsyncpa [#allocation5], 0
    %s17 = scalar_lea.sflag [#allocation5], 1
    %18 = vsyncpa %s17, 0
    %19 = vsyncpa [#allocation11], 0
    %s20 = scalar_lea.sflag [#allocation11], 1
    %21 = vsyncpa %s20, 0
    loop: start=0, step=1, limit=4
    $region2: #{tpu_custom_call.1} parent=1 // loop_pre_header
      _
    $region3: #{tpu_custom_call.1} parent=1 // loop_header
      %s23 = sphi 0, %s27
      %p24 = scmp.ge.s32.totalorder %s23, 4
      %s33 = sphi 0, %s35
      %s36 = sphi 0, %s33
      %s37 = sphi 0, %s36
      %s53 = sphi 0, %s37
      %s57 = sphi 0, %s57
      %s59 = sphi 0, %s57
      %s60 = sphi 0, %s59
      %s74 = sphi 0, %s60
      %s78 = sphi 0, %s78
      %s80 = sphi 0, %s78
      %s81 = sphi 0, %s80
      %s95 = sphi 0, %s81
      %s99 = sphi 0, %s99
      %s101 = sphi 0, %s99
      %s102 = sphi 0, %s101
      %s116 = sphi 0, %s102
      %s122 = sphi 0, %s124
      %s125 = sphi 0, %s122
      %s126 = sphi 0, %s125
      %s142 = sphi 0, %s126
      %s148 = sphi 0, %s150
      %s151 = sphi 0, %s148
      %s152 = sphi 0, %s151
      %s168 = sphi 0, %s152
      %s174 = sphi 0, %s176
      %s177 = sphi 0, %s174
      %s178 = sphi 0, %s177
      %s194 = sphi 0, %s178
    $region4: #{tpu_custom_call.1} parent=1 // loop_header_branch
      %26 = sbr.rel (%p24) target = $region8
    $region5: #{tpu_custom_call.1} parent=1 // loop_body
      %s28 = ssub.s32 %s23, 1
      %s29 = ssub.s32 %s23, 2
      %s30 = sadd.s32 %s23, 1
      %s31 = ssub.s32 %s23, %s30
      %p32 = scmp.eq.s32.totalorder %s31, 0
      %s34 = sadd.s32 %s33, 1
      %s35 = scalar_select %p32, %s33, %s34
      %p38 = pneg %p32
      %p39 = scmp.eq.s32.totalorder %s23, 1
      %p40 = por %p38, %p39
      %p41 = scmp.ne.s32.totalorder %s33, %s36
      %p42 = scmp.eq.s32.totalorder %s23, 0
      %p43 = por %p41, %p42
      %p44 = scmp.ne.s32.totalorder %s33, %s36
      %p45 = scmp.eq.s32.totalorder %s28, 1
      %p46 = por %p44, %p45
      %p47 = scmp.ne.s32.totalorder %s36, %s37
      %p48 = scmp.eq.s32.totalorder %s28, 0
      %p49 = por %p47, %p48
      %p50 = scmp.ne.s32.totalorder %s36, %s37
      %p51 = scmp.eq.s32.totalorder %s29, 1
      %p52 = por %p50, %p51
      %p54 = scmp.ne.s32.totalorder %s37, %s53
      %p55 = scmp.eq.s32.totalorder %s29, 0
      %p56 = por %p54, %p55
      %s58 = sadd.s32 %s57, 1
      %p61 = scmp.eq.s32.totalorder %s23, 1
      %p62 = scmp.ne.s32.totalorder %s57, %s59
      %p63 = scmp.eq.s32.totalorder %s23, 0
      %p64 = por %p62, %p63
      %p65 = scmp.ne.s32.totalorder %s57, %s59
      %p66 = scmp.eq.s32.totalorder %s28, 1
      %p67 = por %p65, %p66
      %p68 = scmp.ne.s32.totalorder %s59, %s60
      %p69 = scmp.eq.s32.totalorder %s28, 0
      %p70 = por %p68, %p69
      %p71 = scmp.ne.s32.totalorder %s59, %s60
      %p72 = scmp.eq.s32.totalorder %s29, 1
      %p73 = por %p71, %p72
      %p75 = scmp.ne.s32.totalorder %s60, %s74
      %p76 = scmp.eq.s32.totalorder %s29, 0
      %p77 = por %p75, %p76
      %s79 = sadd.s32 %s78, 1
      %p82 = scmp.eq.s32.totalorder %s23, 1
      %p83 = scmp.ne.s32.totalorder %s78, %s80
      %p84 = scmp.eq.s32.totalorder %s23, 0
      %p85 = por %p83, %p84
      %p86 = scmp.ne.s32.totalorder %s78, %s80
      %p87 = scmp.eq.s32.totalorder %s28, 1
      %p88 = por %p86, %p87
      %p89 = scmp.ne.s32.totalorder %s80, %s81
      %p90 = scmp.eq.s32.totalorder %s28, 0
      %p91 = por %p89, %p90
      %p92 = scmp.ne.s32.totalorder %s80, %s81
      %p93 = scmp.eq.s32.totalorder %s29, 1
      %p94 = por %p92, %p93
      %p96 = scmp.ne.s32.totalorder %s81, %s95
      %p97 = scmp.eq.s32.totalorder %s29, 0
      %p98 = por %p96, %p97
      %s100 = sadd.s32 %s99, 1
      %p103 = scmp.eq.s32.totalorder %s23, 1
      %p104 = scmp.ne.s32.totalorder %s99, %s101
      %p105 = scmp.eq.s32.totalorder %s23, 0
      %p106 = por %p104, %p105
      %p107 = scmp.ne.s32.totalorder %s99, %s101
      %p108 = scmp.eq.s32.totalorder %s28, 1
      %p109 = por %p107, %p108
      %p110 = scmp.ne.s32.totalorder %s101, %s102
      %p111 = scmp.eq.s32.totalorder %s28, 0
      %p112 = por %p110, %p111
      %p113 = scmp.ne.s32.totalorder %s101, %s102
      %p114 = scmp.eq.s32.totalorder %s29, 1
      %p115 = por %p113, %p114
      %p117 = scmp.ne.s32.totalorder %s102, %s116
      %p118 = scmp.eq.s32.totalorder %s29, 0
      %p119 = por %p117, %p118
      %s120 = ssub.s32 %s23, %s30
      %p121 = scmp.eq.s32.totalorder %s120, 0
      %s123 = sadd.s32 %s122, 1
      %s124 = scalar_select %p121, %s122, %s123
      %p127 = pneg %p121
      %p128 = scmp.eq.s32.totalorder %s23, 1
      %p129 = por %p127, %p128
      %p130 = scmp.ne.s32.totalorder %s122, %s125
      %p131 = scmp.eq.s32.totalorder %s23, 0
      %p132 = por %p130, %p131
      %p133 = scmp.ne.s32.totalorder %s122, %s125
      %p134 = scmp.eq.s32.totalorder %s28, 1
      %p135 = por %p133, %p134
      %p136 = scmp.ne.s32.totalorder %s125, %s126
      %p137 = scmp.eq.s32.totalorder %s28, 0
      %p138 = por %p136, %p137
      %p139 = scmp.ne.s32.totalorder %s125, %s126
      %p140 = scmp.eq.s32.totalorder %s29, 1
      %p141 = por %p139, %p140
      %p143 = scmp.ne.s32.totalorder %s126, %s142
      %p144 = scmp.eq.s32.totalorder %s29, 0
      %p145 = por %p143, %p144
      %s146 = ssub.s32 %s23, %s30
      %p147 = scmp.eq.s32.totalorder %s146, 0
      %s149 = sadd.s32 %s148, 1
      %s150 = scalar_select %p147, %s148, %s149
      %p153 = pneg %p147
      %p154 = scmp.eq.s32.totalorder %s23, 1
      %p155 = por %p153, %p154
      %p156 = scmp.ne.s32.totalorder %s148, %s151
      %p157 = scmp.eq.s32.totalorder %s23, 0
      %p158 = por %p156, %p157
      %p159 = scmp.ne.s32.totalorder %s148, %s151
      %p160 = scmp.eq.s32.totalorder %s28, 1
      %p161 = por %p159, %p160
      %p162 = scmp.ne.s32.totalorder %s151, %s152
      %p163 = scmp.eq.s32.totalorder %s28, 0
      %p164 = por %p162, %p163
      %p165 = scmp.ne.s32.totalorder %s151, %s152
      %p166 = scmp.eq.s32.totalorder %s29, 1
      %p167 = por %p165, %p166
      %p169 = scmp.ne.s32.totalorder %s152, %s168
      %p170 = scmp.eq.s32.totalorder %s29, 0
      %p171 = por %p169, %p170
      %s172 = ssub.s32 %s23, %s30
      %p173 = scmp.eq.s32.totalorder %s172, 0
      %s175 = sadd.s32 %s174, 1
      %s176 = scalar_select %p173, %s174, %s175
      %p179 = pneg %p173
      %p180 = scmp.eq.s32.totalorder %s23, 1
      %p181 = por %p179, %p180
      %p182 = scmp.ne.s32.totalorder %s174, %s177
      %p183 = scmp.eq.s32.totalorder %s23, 0
      %p184 = por %p182, %p183
      %p185 = scmp.ne.s32.totalorder %s174, %s177
      %p186 = scmp.eq.s32.totalorder %s28, 1
      %p187 = por %p185, %p186
      %p188 = scmp.ne.s32.totalorder %s177, %s178
      %p189 = scmp.eq.s32.totalorder %s28, 0
      %p190 = por %p188, %p189
      %p191 = scmp.ne.s32.totalorder %s177, %s178
      %p192 = scmp.eq.s32.totalorder %s29, 1
      %p193 = por %p191, %p192
      %p195 = scmp.ne.s32.totalorder %s178, %s194
      %p196 = scmp.eq.s32.totalorder %s29, 0
      %p197 = por %p195, %p196
      %p198 = scmp.le.s32.totalorder 1, %s23
      %p199 = scmp.lt.s32.totalorder %s23, 3
      %p200 = pnand %p198, %p199
      %p201 = pneg %p200
      // Predicated region
      $region9: #{tpu_custom_call.1} parent=5 // pred_check
        _
      $region10: #{tpu_custom_call.1} parent=5 // pred_check_branch
        %203 = sbr.rel (%p200) target = $region12
      $region11: #{tpu_custom_call.1} parent=5 // pred_region
        %s204 = ssub.s32 %s23, 1
        // Predicated region
        $region13: #{tpu_custom_call.1} parent=11 // pred_check
          %p205 = pneg %p70
        $region14: #{tpu_custom_call.1} parent=11 // pred_check_branch
          %207 = sbr.rel (%p205) target = $region16
        $region15: #{tpu_custom_call.1} parent=11 // pred_region
          %s209 = ssub.s32 256, 256
          %210 = vsyncadd [#allocation7], %s209
          %s211 = sshll.u32 [#allocation6], 4
          %s212 = int_to_ptr.vmem [resolvable:$true] %s211
          %217 = dma.hbm_to_vmem [thread:$0]  %s1, 256, %s212, [#allocation7], 64, 64, 4
        $region16: #{tpu_custom_call.1} parent=11 // pred_fallthru
          _
        // Predicated region
        $region17: #{tpu_custom_call.1} parent=11 // pred_check
          %p218 = pneg %p91
        $region18: #{tpu_custom_call.1} parent=11 // pred_check_branch
          %220 = sbr.rel (%p218) target = $region20
        $region19: #{tpu_custom_call.1} parent=11 // pred_region
          %s222 = ssub.s32 256, 256
          %223 = vsyncadd [#allocation7], %s222
          %s224 = sshll.u32 [#allocation8], 4
          %s225 = int_to_ptr.vmem [resolvable:$true] %s224
          %230 = dma.hbm_to_vmem [thread:$0]  %s2, 256, %s225, [#allocation7], 64, 64, 4
        $region20: #{tpu_custom_call.1} parent=11 // pred_fallthru
          _
        // Predicated region
        $region21: #{tpu_custom_call.1} parent=11 // pred_check
          %p231 = pneg %p112
        $region22: #{tpu_custom_call.1} parent=11 // pred_check_branch
          %233 = sbr.rel (%p231) target = $region24
        $region23: #{tpu_custom_call.1} parent=11 // pred_region
          _
        $region24: #{tpu_custom_call.1} parent=11 // pred_fallthru
          _
      $region12: #{tpu_custom_call.1} parent=5 // pred_fallthru
        _
      %p234 = scmp.lt.s32.totalorder %s23, 2
      // Predicated region
      $region25: #{tpu_custom_call.1} parent=5 // pred_check
        %p235 = pneg %p234
      $region26: #{tpu_custom_call.1} parent=5 // pred_check_branch
        %237 = sbr.rel (%p235) target = $region28
      $region27: #{tpu_custom_call.1} parent=5 // pred_region
        // Predicated region
        $region29: #{tpu_custom_call.1} parent=27 // pred_check
          %p238 = pneg %p43
        $region30: #{tpu_custom_call.1} parent=27 // pred_check_branch
          %240 = sbr.rel (%p238) target = $region32
        $region31: #{tpu_custom_call.1} parent=27 // pred_region
          %s241 = sand.u32 %s33, 1
          %s242 = scalar_lea.sflag [#allocation4], %s241
          %s243 = sand.u32 %s33, 1
          %s244 = smul.addr %s243, 4
          %s245 = scalar_lea.vmem [#allocation3], %s244
          %s247 = ssub.s32 64, 64
          %248 = vsyncadd %s242, %s247
          %s249 = smul.addr %s23, 64
          %s250 = scalar_lea.hbm %s0, %s249
          %s252 = sshll.u32 %s245, 4
          %s253 = int_to_ptr.vmem [resolvable:$true] %s252
          %255 = dma.hbm_to_vmem [thread:$0]  %s250, 64, %s253, %s242
        $region32: #{tpu_custom_call.1} parent=27 // pred_fallthru
          _
      $region28: #{tpu_custom_call.1} parent=5 // pred_fallthru
        _
      %p256 = scmp.le.s32.totalorder 1, %s23
      %p257 = scmp.lt.s32.totalorder %s23, 3
      %p258 = pnand %p256, %p257
      %p259 = pneg %p258
      // Predicated region
      $region33: #{tpu_custom_call.1} parent=5 // pred_check
        _
      $region34: #{tpu_custom_call.1} parent=5 // pred_check_branch
        %261 = sbr.rel (%p258) target = $region36
      $region35: #{tpu_custom_call.1} parent=5 // pred_region
        %s262 = ssub.s32 %s23, 1
        %s263 = sand.u32 %s36, 1
        %s264 = scalar_lea.sflag [#allocation4], %s263
        %s265 = sand.u32 %s36, 1
        %s266 = smul.addr %s265, 4
        %s267 = scalar_lea.vmem [#allocation3], %s266
        // Predicated region
        $region37: #{tpu_custom_call.1} parent=35 // pred_check
          %p268 = pneg %p49
        $region38: #{tpu_custom_call.1} parent=35 // pred_check_branch
          %270 = sbr.rel (%p268) target = $region40
        $region39: #{tpu_custom_call.1} parent=35 // pred_region
          %271 = dma.done %s264, 64
        $region40: #{tpu_custom_call.1} parent=35 // pred_fallthru
          _
        // Predicated region
        $region41: #{tpu_custom_call.1} parent=35 // pred_check
          %p272 = pneg %p70
        $region42: #{tpu_custom_call.1} parent=35 // pred_check_branch
          %274 = sbr.rel (%p272) target = $region44
        $region43: #{tpu_custom_call.1} parent=35 // pred_region
          %275 = dma.done [#allocation7], 256
        $region44: #{tpu_custom_call.1} parent=35 // pred_fallthru
          _
        // Predicated region
        $region45: #{tpu_custom_call.1} parent=35 // pred_check
          %p276 = pneg %p91
        $region46: #{tpu_custom_call.1} parent=35 // pred_check_branch
          %278 = sbr.rel (%p276) target = $region48
        $region47: #{tpu_custom_call.1} parent=35 // pred_region
          %279 = dma.done [#allocation7], 256
        $region48: #{tpu_custom_call.1} parent=35 // pred_fallthru
          _
        %s280 = sand.u32 %s36, 1
        %s281 = scalar_lea.sflag [#allocation4], %s280
        %s282 = sand.u32 %s36, 1
        %s283 = smul.addr %s282, 4
        %s284 = scalar_lea.vmem [#allocation3], %s283
        %p285 = pneg %p49
        %p286 = pneg %p46
        %p287 = pneg %p70
        %p288 = pneg %p67
        %p289 = pneg %p91
        %p290 = pneg %p88
        %p291 = pneg %p112
        %p292 = pneg %p109
        %p293 = pneg %p138
        %p294 = pneg %p135
        %s295 = sand.u32 %s125, 1
        %s296 = scalar_lea.sflag [#allocation5], %s295
        %s297 = sand.u32 %s125, 1
        %s298 = smul.addr %s297, 8
        %s299 = scalar_lea.vmem [#allocation9], %s298
        %p300 = pneg %p164
        %p301 = pneg %p161
        %s302 = sand.u32 %s28, 1
        %s303 = scalar_lea.sflag [#allocation11], %s302
        %s304 = sand.u32 %s151, 1
        %s305 = smul.addr %s304, 12
        %s306 = scalar_lea.vmem [#allocation10], %s305
        %p307 = pneg %p190
        %p308 = pneg %p187
        %s309 = sand.u32 %s28, 1
        %s310 = scalar_lea.sflag [#allocation11], %s309
        %s311 = sand.u32 %s177, 1
        %s312 = smul.addr %s311, 12
        %s313 = scalar_lea.vmem [#allocation12], %s312
        %v315 = vld [vmem:[%s267] sm:$0xf]
        %v316 = vld [vmem:[#allocation6] sm:$0xf]
        %v317 = vld [vmem:[#allocation6 + $0x4] sm:$0xf]
        %v318 = vld [vmem:[#allocation6 + $0x8] sm:$0xf]
        %v319 = vld [vmem:[#allocation6 + $0xc] sm:$0xf]
        %v324 = vunpack.c.l.b16 %v316
        %v325 = vunpack.c.l.b16 %v317
        %v326 = vunpack.c.l.b16 %v318
        %v327 = vunpack.c.l.b16 %v319
        %v328 = vpack.c.b16 %v325, %v324
        %v329 = vpack.c.b16 %v327, %v326
        %vm332 = vcmask 261120
        %v334 = vsel %vm332, %v315, 0
        %336 = vmatprep.subr.bf16.mxu0 0
        %337 = vmatpush1.bf16.msra.mxu0 0
        %338 = vmatprep.subr.bf16.mxu0 0
        %339 = vmatpush1.bf16.msra.mxu0 0
        %340 = vmatprep.subr.bf16.mxu0 0
        %341 = vmatpush1.bf16.msra.mxu0 0
        %342 = vmatprep.subr.bf16.mxu0 0
        %343 = vmatpush1.bf16.msra.mxu0 0
        %344 = vmatprep.subr.bf16.mxu0 0
        %345 = vmatpush1.bf16.msra.mxu0 0
        %346 = vmatprep.subr.bf16.mxu0 0
        %347 = vmatpush1.bf16.msra.mxu0 0
        %348 = vmatprep.subr.bf16.mxu0 0
        %349 = vmatpush1.bf16.msra.mxu0 %v329
        %350 = vmatprep.subr.bf16.mxu0 0
        %351 = vmatpush1.bf16.msra.mxu0 %v328
        %352 = vmatprep.subr.bf16.mxu0 0
        %353 = vmatpush2.bf16.msra.mxu0 0
        %354 = vmatprep.subr.bf16.mxu0 0
        %355 = vmatpush2.bf16.msra.mxu0 0
        %356 = vmatprep.subr.bf16.mxu0 0
        %357 = vmatpush2.bf16.msra.mxu0 0
        %358 = vmatprep.subr.bf16.mxu0 0
        %359 = vmatpush2.bf16.msra.mxu0 0
        %360 = vmatprep.subr.bf16.mxu0 0
        %361 = vmatpush2.bf16.msra.mxu0 0
        %362 = vmatprep.subr.bf16.mxu0 0
        %363 = vmatpush2.bf16.msra.mxu0 0
        %364 = vmatprep.subr.bf16.mxu0 0
        %365 = vmatpush2.bf16.msra.mxu0 0
        %366 = vmatprep.subr.bf16.mxu0 0
        %367 = vmatpush2.bf16.msra.mxu0 0
        %368 = vmatprep.mubr.bf16.mxu0 0
        %369 = vmatmul.mubr.bf16.gmra.mxu0 %v334
        %v370 = vpop.f32.mrf.mxu0
        %v371 = vadd.f32 0.0, %v370
        %v372 = vpop.f32.mrf.mxu0
        %v373 = vpop.f32.mrf.mxu0
        %v374 = vpop.f32.mrf.mxu0
        %375 = vdwg.mxu0
        %v376 = vpack.c.bf16 %v371, %v371
        %v378 = vunpack.c.l.b16 %v376
        %v379 = vpack.c.b16 %v378, %v378
        %380 = vrot.lane.b32.xlu0 %v379, 96
        %v381 = vpop.permute.xlu0 %380
        %vm383 = vcmask 257024
        %384 = vst.msk [vmem:[%s306] sm:$0xf] %vm383, %v381
        %385 = vrot.lane.b32.xlu0 %v379, 64
        %v386 = vpop.permute.xlu0 %385
        %388 = vst.msk [vmem:[%s313] sm:$0xf] %vm383, %v386
        %389 = vst.msk [vmem:[%s306 + $0x4] sm:$0xf] %vm383, 0
        %390 = vst.msk [vmem:[%s306 + $0x8] sm:$0xf] %vm383, 0
        %391 = vst.msk [vmem:[%s313 + $0x4] sm:$0xf] %vm383, 0
        %392 = vst.msk [vmem:[%s313 + $0x8] sm:$0xf] %vm383, 0
        %v393 = vlaneseq
        %v394 = vshrl.u32 %v393, 7
        %v395 = vlaneseq
        %v396 = vand.u32 %v395, 127
        %vm397 = vcmp.le.s32.totalorder %v396, %v394
        %398 = vrot.lane.b32.xlu0 %v376, 96
        %v399 = vpop.permute.xlu0 %398
        %vm400 = vcmask 64512
        %v402 = vsel %vm400, %v376, 0
        %v405 = vsel %vm400, %v399, 0
        %407 = vmatprep.subr.bf16.mxu0 0
        %408 = vmatpush1.bf16.xpose.msra.mxu0 0
        %409 = vmatprep.subr.bf16.mxu0 0
        %410 = vmatpush1.bf16.xpose.msra.mxu0 0
        %411 = vmatprep.subr.bf16.mxu0 0
        %412 = vmatpush1.bf16.xpose.msra.mxu0 0
        %413 = vmatprep.subr.bf16.mxu0 0
        %414 = vmatpush1.bf16.xpose.msra.mxu0 0
        %415 = vmatprep.subr.bf16.mxu0 0
        %416 = vmatpush1.bf16.xpose.msra.mxu0 0
        %417 = vmatprep.subr.bf16.mxu0 0
        %418 = vmatpush1.bf16.xpose.msra.mxu0 0
        %419 = vmatprep.subr.bf16.mxu0 0
        %420 = vmatpush1.bf16.xpose.msra.mxu0 0
        %421 = vmatprep.subr.bf16.mxu0 0
        %422 = vmatpush1.bf16.xpose.msra.mxu0 %v405
        %423 = vmatprep.subr.bf16.mxu0 0
        %424 = vmatpush2.bf16.xpose.msra.mxu0 0
        %425 = vmatprep.subr.bf16.mxu0 0
        %426 = vmatpush2.bf16.xpose.msra.mxu0 0
        %427 = vmatprep.subr.bf16.mxu0 0
        %428 = vmatpush2.bf16.xpose.msra.mxu0 0
        %429 = vmatprep.subr.bf16.mxu0 0
        %430 = vmatpush2.bf16.xpose.msra.mxu0 0
        %431 = vmatprep.subr.bf16.mxu0 0
        %432 = vmatpush2.bf16.xpose.msra.mxu0 0
        %433 = vmatprep.subr.bf16.mxu0 0
        %434 = vmatpush2.bf16.xpose.msra.mxu0 0
        %435 = vmatprep.subr.bf16.mxu0 0
        %436 = vmatpush2.bf16.xpose.msra.mxu0 0
        %437 = vmatprep.subr.bf16.mxu0 0
        %438 = vmatpush2.bf16.xpose.msra.mxu0 0
        %439 = vmatprep.mubr.bf16.mxu0 0
        %440 = vmatmul.mubr.bf16.gmra.mxu0 %v402
        %v441 = vpop.f32.mrf.mxu0
        %v442 = vadd.f32 0.0, %v441
        %v443 = vpop.f32.mrf.mxu0
        %v444 = vpop.f32.mrf.mxu0
        %v445 = vpop.f32.mrf.mxu0
        %446 = vdwg.mxu0
        %v447 = vsel %vm397, %v442, -1e+38
        %v448 = vsel %vm400, %v447, -inf
        %449 = vmax.xlane.f32.xlu0 %v448
        %v450 = vpop.xlane.xlu0 %449
        %v451 = vsub.f32 %v447, %v450
        %v452 = vmul.f32 %v451, 1.442695
        %v453 = vpow.pop %v452
        %v454 = vsel %vm400, %v453, 0.0
        %455 = vadd.xlane.f32.xlu0 %v454
        %v456 = vpop.xlane.xlu0 %455
        %v457 = vrcp.pop %v456
        %v458 = vmul.f32 %v453, %v457
        %v459 = vpack.c.bf16 %v458, %v458
        %460 = vrot.lane.b32.xlu0 %v376, 64
        %v461 = vpop.permute.xlu0 %460
        %v463 = vsel %vm400, %v459, 0
        %vm465 = vcmask 1043456
        %v467 = vsel %vm465, %v461, 0
        %469 = vmatprep.subr.bf16.mxu0 0
        %470 = vmatpush1.bf16.msra.mxu0 0
        %471 = vmatprep.subr.bf16.mxu0 0
        %472 = vmatpush1.bf16.msra.mxu0 0
        %473 = vmatprep.subr.bf16.mxu0 0
        %474 = vmatpush1.bf16.msra.mxu0 0
        %475 = vmatprep.subr.bf16.mxu0 0
        %476 = vmatpush1.bf16.msra.mxu0 0
        %477 = vmatprep.subr.bf16.mxu0 0
        %478 = vmatpush1.bf16.msra.mxu0 0
        %479 = vmatprep.subr.bf16.mxu0 0
        %480 = vmatpush1.bf16.msra.mxu0 0
        %481 = vmatprep.subr.bf16.mxu0 0
        %482 = vmatpush1.bf16.msra.mxu0 0
        %483 = vmatprep.subr.bf16.mxu0 0
        %484 = vmatpush1.bf16.msra.mxu0 %v467
        %485 = vmatprep.subr.bf16.mxu0 0
        %486 = vmatpush2.bf16.msra.mxu0 0
        %487 = vmatprep.subr.bf16.mxu0 0
        %488 = vmatpush2.bf16.msra.mxu0 0
        %489 = vmatprep.subr.bf16.mxu0 0
        %490 = vmatpush2.bf16.msra.mxu0 0
        %491 = vmatprep.subr.bf16.mxu0 0
        %492 = vmatpush2.bf16.msra.mxu0 0
        %493 = vmatprep.subr.bf16.mxu0 0
        %494 = vmatpush2.bf16.msra.mxu0 0
        %495 = vmatprep.subr.bf16.mxu0 0
        %496 = vmatpush2.bf16.msra.mxu0 0
        %497 = vmatprep.subr.bf16.mxu0 0
        %498 = vmatpush2.bf16.msra.mxu0 0
        %499 = vmatprep.subr.bf16.mxu0 0
        %500 = vmatpush2.bf16.msra.mxu0 0
        %501 = vmatprep.mubr.bf16.mxu0 0
        %502 = vmatmul.mubr.bf16.gmra.mxu0 %v463
        %v503 = vpop.f32.mrf.mxu0
        %v504 = vadd.f32 0.0, %v503
        %v505 = vpop.f32.mrf.mxu0
        %v506 = vpop.f32.mrf.mxu0
        %v507 = vpop.f32.mrf.mxu0
        %508 = vdwg.mxu0
        %v509 = vpack.c.bf16 %v504, %v504
        %vm510 = vcmask 60416
        %511 = vst.msk [vmem:[#allocation2] sm:$0xf] %vm510, %v509
        %512 = vrot.lane.b32.xlu0 %v376, 120
        %v513 = vpop.permute.xlu0 %512
        %514 = vrot.lane.b32.xlu0 %v376, 88
        %v515 = vpop.permute.xlu0 %514
        %v517 = vsel %vm400, %v513, 0
        %v520 = vsel %vm400, %v515, 0
        %522 = vmatprep.subr.bf16.mxu0 0
        %523 = vmatpush1.bf16.xpose.msra.mxu0 0
        %524 = vmatprep.subr.bf16.mxu0 0
        %525 = vmatpush1.bf16.xpose.msra.mxu0 0
        %526 = vmatprep.subr.bf16.mxu0 0
        %527 = vmatpush1.bf16.xpose.msra.mxu0 0
        %528 = vmatprep.subr.bf16.mxu0 0
        %529 = vmatpush1.bf16.xpose.msra.mxu0 0
        %530 = vmatprep.subr.bf16.mxu0 0
        %531 = vmatpush1.bf16.xpose.msra.mxu0 0
        %532 = vmatprep.subr.bf16.mxu0 0
        %533 = vmatpush1.bf16.xpose.msra.mxu0 0
        %534 = vmatprep.subr.bf16.mxu0 0
        %535 = vmatpush1.bf16.xpose.msra.mxu0 0
        %536 = vmatprep.subr.bf16.mxu0 0
        %537 = vmatpush1.bf16.xpose.msra.mxu0 %v520
        %538 = vmatprep.subr.bf16.mxu0 0
        %539 = vmatpush2.bf16.xpose.msra.mxu0 0
        %540 = vmatprep.subr.bf16.mxu0 0
        %541 = vmatpush2.bf16.xpose.msra.mxu0 0
        %542 = vmatprep.subr.bf16.mxu0 0
        %543 = vmatpush2.bf16.xpose.msra.mxu0 0
        %544 = vmatprep.subr.bf16.mxu0 0
        %545 = vmatpush2.bf16.xpose.msra.mxu0 0
        %546 = vmatprep.subr.bf16.mxu0 0
        %547 = vmatpush2.bf16.xpose.msra.mxu0 0
        %548 = vmatprep.subr.bf16.mxu0 0
        %549 = vmatpush2.bf16.xpose.msra.mxu0 0
        %550 = vmatprep.subr.bf16.mxu0 0
        %551 = vmatpush2.bf16.xpose.msra.mxu0 0
        %552 = vmatprep.subr.bf16.mxu0 0
        %553 = vmatpush2.bf16.xpose.msra.mxu0 0
        %554 = vmatprep.mubr.bf16.mxu0 0
        %555 = vmatmul.mubr.bf16.gmra.mxu0 %v517
        %v556 = vpop.f32.mrf.mxu0
        %v557 = vadd.f32 0.0, %v556
        %v558 = vpop.f32.mrf.mxu0
        %v559 = vpop.f32.mrf.mxu0
        %v560 = vpop.f32.mrf.mxu0
        %561 = vdwg.mxu0
        %v562 = vsel %vm397, %v557, -1e+38
        %v563 = vsel %vm400, %v562, -inf
        %564 = vmax.xlane.f32.xlu0 %v563
        %v565 = vpop.xlane.xlu0 %564
        %v566 = vsub.f32 %v562, %v565
        %v567 = vmul.f32 %v566, 1.442695
        %v568 = vpow.pop %v567
        %v569 = vsel %vm400, %v568, 0.0
        %570 = vadd.xlane.f32.xlu0 %v569
        %v571 = vpop.xlane.xlu0 %570
        %v572 = vrcp.pop %v571
        %v573 = vmul.f32 %v568, %v572
        %v574 = vpack.c.bf16 %v573, %v573
        %575 = vrot.lane.b32.xlu0 %v376, 56
        %v576 = vpop.permute.xlu0 %575
        %v578 = vsel %vm400, %v574, 0
        %v581 = vsel %vm465, %v576, 0
        %583 = vmatprep.subr.bf16.mxu0 0
        %584 = vmatpush1.bf16.msra.mxu0 0
        %585 = vmatprep.subr.bf16.mxu0 0
        %586 = vmatpush1.bf16.msra.mxu0 0
        %587 = vmatprep.subr.bf16.mxu0 0
        %588 = vmatpush1.bf16.msra.mxu0 0
        %589 = vmatprep.subr.bf16.mxu0 0
        %590 = vmatpush1.bf16.msra.mxu0 0
        %591 = vmatprep.subr.bf16.mxu0 0
        %592 = vmatpush1.bf16.msra.mxu0 0
        %593 = vmatprep.subr.bf16.mxu0 0
        %594 = vmatpush1.bf16.msra.mxu0 0
        %595 = vmatprep.subr.bf16.mxu0 0
        %596 = vmatpush1.bf16.msra.mxu0 0
        %597 = vmatprep.subr.bf16.mxu0 0
        %598 = vmatpush1.bf16.msra.mxu0 %v581
        %599 = vmatprep.subr.bf16.mxu0 0
        %600 = vmatpush2.bf16.msra.mxu0 0
        %601 = vmatprep.subr.bf16.mxu0 0
        %602 = vmatpush2.bf16.msra.mxu0 0
        %603 = vmatprep.subr.bf16.mxu0 0
        %604 = vmatpush2.bf16.msra.mxu0 0
        %605 = vmatprep.subr.bf16.mxu0 0
        %606 = vmatpush2.bf16.msra.mxu0 0
        %607 = vmatprep.subr.bf16.mxu0 0
        %608 = vmatpush2.bf16.msra.mxu0 0
        %609 = vmatprep.subr.bf16.mxu0 0
        %610 = vmatpush2.bf16.msra.mxu0 0
        %611 = vmatprep.subr.bf16.mxu0 0
        %612 = vmatpush2.bf16.msra.mxu0 0
        %613 = vmatprep.subr.bf16.mxu0 0
        %614 = vmatpush2.bf16.msra.mxu0 0
        %615 = vmatprep.mubr.bf16.mxu0 0
        %616 = vmatmul.mubr.bf16.gmra.mxu0 %v578
        %v617 = vpop.f32.mrf.mxu0
        %v618 = vadd.f32 0.0, %v617
        %v619 = vpop.f32.mrf.mxu0
        %v620 = vpop.f32.mrf.mxu0
        %v621 = vpop.f32.mrf.mxu0
        %622 = vdwg.mxu0
        %v623 = vpack.c.bf16 %v618, %v618
        %v625 = vunpack.c.l.b16 %v623
        %v626 = vpack.c.b16 %v625, %v625
        %627 = vrot.lane.b32.xlu0 %v626, 8
        %v628 = vpop.permute.xlu0 %627
        %vm630 = vcmask 126016
        %631 = vst.msk [vmem:[#allocation2] sm:$0xf] %vm630, %v628
        %632 = vrot.lane.b32.xlu0 %v376, 112
        %v633 = vpop.permute.xlu0 %632
        %634 = vrot.lane.b32.xlu0 %v376, 80
        %v635 = vpop.permute.xlu0 %634
        %v637 = vsel %vm400, %v633, 0
        %v640 = vsel %vm400, %v635, 0
        %642 = vmatprep.subr.bf16.mxu0 0
        %643 = vmatpush1.bf16.xpose.msra.mxu0 0
        %644 = vmatprep.subr.bf16.mxu0 0
        %645 = vmatpush1.bf16.xpose.msra.mxu0 0
        %646 = vmatprep.subr.bf16.mxu0 0
        %647 = vmatpush1.bf16.xpose.msra.mxu0 0
        %648 = vmatprep.subr.bf16.mxu0 0
        %649 = vmatpush1.bf16.xpose.msra.mxu0 0
        %650 = vmatprep.subr.bf16.mxu0 0
        %651 = vmatpush1.bf16.xpose.msra.mxu0 0
        %652 = vmatprep.subr.bf16.mxu0 0
        %653 = vmatpush1.bf16.xpose.msra.mxu0 0
        %654 = vmatprep.subr.bf16.mxu0 0
        %655 = vmatpush1.bf16.xpose.msra.mxu0 0
        %656 = vmatprep.subr.bf16.mxu0 0
        %657 = vmatpush1.bf16.xpose.msra.mxu0 %v640
        %658 = vmatprep.subr.bf16.mxu0 0
        %659 = vmatpush2.bf16.xpose.msra.mxu0 0
        %660 = vmatprep.subr.bf16.mxu0 0
        %661 = vmatpush2.bf16.xpose.msra.mxu0 0
        %662 = vmatprep.subr.bf16.mxu0 0
        %663 = vmatpush2.bf16.xpose.msra.mxu0 0
        %664 = vmatprep.subr.bf16.mxu0 0
        %665 = vmatpush2.bf16.xpose.msra.mxu0 0
        %666 = vmatprep.subr.bf16.mxu0 0
        %667 = vmatpush2.bf16.xpose.msra.mxu0 0
        %668 = vmatprep.subr.bf16.mxu0 0
        %669 = vmatpush2.bf16.xpose.msra.mxu0 0
        %670 = vmatprep.subr.bf16.mxu0 0
        %671 = vmatpush2.bf16.xpose.msra.mxu0 0
        %672 = vmatprep.subr.bf16.mxu0 0
        %673 = vmatpush2.bf16.xpose.msra.mxu0 0
        %674 = vmatprep.mubr.bf16.mxu0 0
        %675 = vmatmul.mubr.bf16.gmra.mxu0 %v637
        %v676 = vpop.f32.mrf.mxu0
        %v677 = vadd.f32 0.0, %v676
        %v678 = vpop.f32.mrf.mxu0
        %v679 = vpop.f32.mrf.mxu0
        %v680 = vpop.f32.mrf.mxu0
        %681 = vdwg.mxu0
        %v682 = vsel %vm397, %v677, -1e+38
        %v683 = vsel %vm400, %v682, -inf
        %684 = vmax.xlane.f32.xlu0 %v683
        %v685 = vpop.xlane.xlu0 %684
        %v686 = vsub.f32 %v682, %v685
        %v687 = vmul.f32 %v686, 1.442695
        %v688 = vpow.pop %v687
        %v689 = vsel %vm400, %v688, 0.0
        %690 = vadd.xlane.f32.xlu0 %v689
        %v691 = vpop.xlane.xlu0 %690
        %v692 = vrcp.pop %v691
        %v693 = vmul.f32 %v688, %v692
        %v694 = vpack.c.bf16 %v693, %v693
        %695 = vrot.lane.b32.xlu0 %v376, 48
        %v696 = vpop.permute.xlu0 %695
        %v698 = vsel %vm400, %v694, 0
        %v701 = vsel %vm465, %v696, 0
        %703 = vmatprep.subr.bf16.mxu0 0
        %704 = vmatpush1.bf16.msra.mxu0 0
        %705 = vmatprep.subr.bf16.mxu0 0
        %706 = vmatpush1.bf16.msra.mxu0 0
        %707 = vmatprep.subr.bf16.mxu0 0
        %708 = vmatpush1.bf16.msra.mxu0 0
        %709 = vmatprep.subr.bf16.mxu0 0
        %710 = vmatpush1.bf16.msra.mxu0 0
        %711 = vmatprep.subr.bf16.mxu0 0
        %712 = vmatpush1.bf16.msra.mxu0 0
        %713 = vmatprep.subr.bf16.mxu0 0
        %714 = vmatpush1.bf16.msra.mxu0 0
        %715 = vmatprep.subr.bf16.mxu0 0
        %716 = vmatpush1.bf16.msra.mxu0 0
        %717 = vmatprep.subr.bf16.mxu0 0
        %718 = vmatpush1.bf16.msra.mxu0 %v701
        %719 = vmatprep.subr.bf16.mxu0 0
        %720 = vmatpush2.bf16.msra.mxu0 0
        %721 = vmatprep.subr.bf16.mxu0 0
        %722 = vmatpush2.bf16.msra.mxu0 0
        %723 = vmatprep.subr.bf16.mxu0 0
        %724 = vmatpush2.bf16.msra.mxu0 0
        %725 = vmatprep.subr.bf16.mxu0 0
        %726 = vmatpush2.bf16.msra.mxu0 0
        %727 = vmatprep.subr.bf16.mxu0 0
        %728 = vmatpush2.bf16.msra.mxu0 0
        %729 = vmatprep.subr.bf16.mxu0 0
        %730 = vmatpush2.bf16.msra.mxu0 0
        %731 = vmatprep.subr.bf16.mxu0 0
        %732 = vmatpush2.bf16.msra.mxu0 0
        %733 = vmatprep.subr.bf16.mxu0 0
        %734 = vmatpush2.bf16.msra.mxu0 0
        %735 = vmatprep.mubr.bf16.mxu0 0
        %736 = vmatmul.mubr.bf16.gmra.mxu0 %v698
        %v737 = vpop.f32.mrf.mxu0
        %v738 = vadd.f32 0.0, %v737
        %v739 = vpop.f32.mrf.mxu0
        %v740 = vpop.f32.mrf.mxu0
        %v741 = vpop.f32.mrf.mxu0
        %742 = vdwg.mxu0
        %v743 = vpack.c.bf16 %v738, %v738
        %v745 = vunpack.c.l.b16 %v743
        %v746 = vpack.c.b16 %v745, %v745
        %747 = vrot.lane.b32.xlu0 %v746, 16
        %v748 = vpop.permute.xlu0 %747
        %vm750 = vcmask 191616
        %751 = vst.msk [vmem:[#allocation2] sm:$0xf] %vm750, %v748
        %752 = vrot.lane.b32.xlu0 %v376, 104
        %v753 = vpop.permute.xlu0 %752
        %754 = vrot.lane.b32.xlu0 %v376, 72
        %v755 = vpop.permute.xlu0 %754
        %v757 = vsel %vm400, %v753, 0
        %v760 = vsel %vm400, %v755, 0
        %762 = vmatprep.subr.bf16.mxu0 0
        %763 = vmatpush1.bf16.xpose.msra.mxu0 0
        %764 = vmatprep.subr.bf16.mxu0 0
        %765 = vmatpush1.bf16.xpose.msra.mxu0 0
        %766 = vmatprep.subr.bf16.mxu0 0
        %767 = vmatpush1.bf16.xpose.msra.mxu0 0
        %768 = vmatprep.subr.bf16.mxu0 0
        %769 = vmatpush1.bf16.xpose.msra.mxu0 0
        %770 = vmatprep.subr.bf16.mxu0 0
        %771 = vmatpush1.bf16.xpose.msra.mxu0 0
        %772 = vmatprep.subr.bf16.mxu0 0
        %773 = vmatpush1.bf16.xpose.msra.mxu0 0
        %774 = vmatprep.subr.bf16.mxu0 0
        %775 = vmatpush1.bf16.xpose.msra.mxu0 0
        %776 = vmatprep.subr.bf16.mxu0 0
        %777 = vmatpush1.bf16.xpose.msra.mxu0 %v760
        %778 = vmatprep.subr.bf16.mxu0 0
        %779 = vmatpush2.bf16.xpose.msra.mxu0 0
        %780 = vmatprep.subr.bf16.mxu0 0
        %781 = vmatpush2.bf16.xpose.msra.mxu0 0
        %782 = vmatprep.subr.bf16.mxu0 0
        %783 = vmatpush2.bf16.xpose.msra.mxu0 0
        %784 = vmatprep.subr.bf16.mxu0 0
        %785 = vmatpush2.bf16.xpose.msra.mxu0 0
        %786 = vmatprep.subr.bf16.mxu0 0
        %787 = vmatpush2.bf16.xpose.msra.mxu0 0
        %788 = vmatprep.subr.bf16.mxu0 0
        %789 = vmatpush2.bf16.xpose.msra.mxu0 0
        %790 = vmatprep.subr.bf16.mxu0 0
        %791 = vmatpush2.bf16.xpose.msra.mxu0 0
        %792 = vmatprep.subr.bf16.mxu0 0
        %793 = vmatpush2.bf16.xpose.msra.mxu0 0
        %794 = vmatprep.mubr.bf16.mxu0 0
        %795 = vmatmul.mubr.bf16.gmra.mxu0 %v757
        %v796 = vpop.f32.mrf.mxu0
        %v797 = vadd.f32 0.0, %v796
        %v798 = vpop.f32.mrf.mxu0
        %v799 = vpop.f32.mrf.mxu0
        %v800 = vpop.f32.mrf.mxu0
        %801 = vdwg.mxu0
        %v802 = vsel %vm397, %v797, -1e+38
        %v803 = vsel %vm400, %v802, -inf
        %804 = vmax.xlane.f32.xlu0 %v803
        %v805 = vpop.xlane.xlu0 %804
        %v806 = vsub.f32 %v802, %v805
        %v807 = vmul.f32 %v806, 1.442695
        %v808 = vpow.pop %v807
        %v809 = vsel %vm400, %v808, 0.0
        %810 = vadd.xlane.f32.xlu0 %v809
        %v811 = vpop.xlane.xlu0 %810
        %v812 = vrcp.pop %v811
        %v813 = vmul.f32 %v808, %v812
        %v814 = vpack.c.bf16 %v813, %v813
        %815 = vrot.lane.b32.xlu0 %v376, 40
        %v816 = vpop.permute.xlu0 %815
        %v818 = vsel %vm400, %v814, 0
        %v821 = vsel %vm465, %v816, 0
        %823 = vmatprep.subr.bf16.mxu0 0
        %824 = vmatpush1.bf16.msra.mxu0 0
        %825 = vmatprep.subr.bf16.mxu0 0
        %826 = vmatpush1.bf16.msra.mxu0 0
        %827 = vmatprep.subr.bf16.mxu0 0
        %828 = vmatpush1.bf16.msra.mxu0 0
        %829 = vmatprep.subr.bf16.mxu0 0
        %830 = vmatpush1.bf16.msra.mxu0 0
        %831 = vmatprep.subr.bf16.mxu0 0
        %832 = vmatpush1.bf16.msra.mxu0 0
        %833 = vmatprep.subr.bf16.mxu0 0
        %834 = vmatpush1.bf16.msra.mxu0 0
        %835 = vmatprep.subr.bf16.mxu0 0
        %836 = vmatpush1.bf16.msra.mxu0 0
        %837 = vmatprep.subr.bf16.mxu0 0
        %838 = vmatpush1.bf16.msra.mxu0 %v821
        %839 = vmatprep.subr.bf16.mxu0 0
        %840 = vmatpush2.bf16.msra.mxu0 0
        %841 = vmatprep.subr.bf16.mxu0 0
        %842 = vmatpush2.bf16.msra.mxu0 0
        %843 = vmatprep.subr.bf16.mxu0 0
        %844 = vmatpush2.bf16.msra.mxu0 0
        %845 = vmatprep.subr.bf16.mxu0 0
        %846 = vmatpush2.bf16.msra.mxu0 0
        %847 = vmatprep.subr.bf16.mxu0 0
        %848 = vmatpush2.bf16.msra.mxu0 0
        %849 = vmatprep.subr.bf16.mxu0 0
        %850 = vmatpush2.bf16.msra.mxu0 0
        %851 = vmatprep.subr.bf16.mxu0 0
        %852 = vmatpush2.bf16.msra.mxu0 0
        %853 = vmatprep.subr.bf16.mxu0 0
        %854 = vmatpush2.bf16.msra.mxu0 0
        %855 = vmatprep.mubr.bf16.mxu0 0
        %856 = vmatmul.mubr.bf16.gmra.mxu0 %v818
        %v857 = vpop.f32.mrf.mxu0
        %v858 = vadd.f32 0.0, %v857
        %v859 = vpop.f32.mrf.mxu0
        %v860 = vpop.f32.mrf.mxu0
        %v861 = vpop.f32.mrf.mxu0
        %862 = vdwg.mxu0
        %v863 = vpack.c.bf16 %v858, %v858
        %v865 = vunpack.c.l.b16 %v863
        %v866 = vpack.c.b16 %v865, %v865
        %867 = vrot.lane.b32.xlu0 %v866, 24
        %v868 = vpop.permute.xlu0 %867
        %vm870 = vcmask 257216
        %871 = vst.msk [vmem:[#allocation2] sm:$0xf] %vm870, %v868
        %v872 = vld [vmem:[#allocation2] sm:$0xf]
        %v873 = vld [vmem:[#allocation8] sm:$0xf]
        %v874 = vld [vmem:[#allocation8 + $0x4] sm:$0xf]
        %v875 = vld [vmem:[#allocation8 + $0x8] sm:$0xf]
        %v876 = vld [vmem:[#allocation8 + $0xc] sm:$0xf]
        %v877 = vld [vmem:[%s3] sm:$0x1]
        %v879 = vlaneseq
        %v880 = vshrl.u32 %v879, 7
        %v881 = vsub.s32 0, %v880
        %v882 = vrot.slane %v877, %v881
        %v888 = vunpack.c.l.b16 %v873
        %v889 = vunpack.c.l.b16 %v874
        %v890 = vunpack.c.l.b16 %v875
        %v891 = vunpack.c.l.b16 %v876
        %v892 = vpack.c.b16 %v889, %v888
        %v893 = vpack.c.b16 %v891, %v890
        %v897 = vsel %vm332, %v872, 0
        %899 = vmatprep.subr.bf16.mxu0 0
        %900 = vmatpush1.bf16.msra.mxu0 0
        %901 = vmatprep.subr.bf16.mxu0 0
        %902 = vmatpush1.bf16.msra.mxu0 0
        %903 = vmatprep.subr.bf16.mxu0 0
        %904 = vmatpush1.bf16.msra.mxu0 0
        %905 = vmatprep.subr.bf16.mxu0 0
        %906 = vmatpush1.bf16.msra.mxu0 0
        %907 = vmatprep.subr.bf16.mxu0 0
        %908 = vmatpush1.bf16.msra.mxu0 0
        %909 = vmatprep.subr.bf16.mxu0 0
        %910 = vmatpush1.bf16.msra.mxu0 0
        %911 = vmatprep.subr.bf16.mxu0 0
        %912 = vmatpush1.bf16.msra.mxu0 %v893
        %913 = vmatprep.subr.bf16.mxu0 0
        %914 = vmatpush1.bf16.msra.mxu0 %v892
        %915 = vmatprep.subr.bf16.mxu0 0
        %916 = vmatpush2.bf16.msra.mxu0 0
        %917 = vmatprep.subr.bf16.mxu0 0
        %918 = vmatpush2.bf16.msra.mxu0 0
        %919 = vmatprep.subr.bf16.mxu0 0
        %920 = vmatpush2.bf16.msra.mxu0 0
        %921 = vmatprep.subr.bf16.mxu0 0
        %922 = vmatpush2.bf16.msra.mxu0 0
        %923 = vmatprep.subr.bf16.mxu0 0
        %924 = vmatpush2.bf16.msra.mxu0 0
        %925 = vmatprep.subr.bf16.mxu0 0
        %926 = vmatpush2.bf16.msra.mxu0 0
        %927 = vmatprep.subr.bf16.mxu0 0
        %928 = vmatpush2.bf16.msra.mxu0 0
        %929 = vmatprep.subr.bf16.mxu0 0
        %930 = vmatpush2.bf16.msra.mxu0 0
        %931 = vmatprep.mubr.bf16.mxu0 0
        %932 = vmatmul.mubr.bf16.gmra.mxu0 %v897
        %v933 = vpop.f32.mrf.mxu0
        %v934 = vadd.f32 %v882, %v933
        %v935 = vpop.f32.mrf.mxu0
        %v936 = vpop.f32.mrf.mxu0
        %v937 = vpop.f32.mrf.mxu0
        %938 = vdwg.mxu0
        %939 = vst.msk [vmem:[%s299] sm:$0xff] %vm332, %v934
        %s940 = sand.u32 %s125, 1
        %s941 = scalar_lea.sflag [#allocation5], %s940
        %s942 = sand.u32 %s125, 1
        %s943 = smul.addr %s942, 8
        %s944 = scalar_lea.vmem [#allocation9], %s943
        %s945 = sand.u32 %s28, 1
        %s946 = scalar_lea.sflag [#allocation11], %s945
        %s947 = sand.u32 %s151, 1
        %s948 = smul.addr %s947, 12
        %s949 = scalar_lea.vmem [#allocation10], %s948
        %s950 = sand.u32 %s28, 1
        %s951 = scalar_lea.sflag [#allocation11], %s950
        %s952 = sand.u32 %s177, 1
        %s953 = smul.addr %s952, 12
        %s954 = scalar_lea.vmem [#allocation12], %s953
        // Predicated region
        $region49: #{tpu_custom_call.1} parent=35 // pred_check
          %p955 = pneg %p135
        $region50: #{tpu_custom_call.1} parent=35 // pred_check_branch
          %957 = sbr.rel (%p955) target = $region52
        $region51: #{tpu_custom_call.1} parent=35 // pred_region
          %s959 = ssub.s32 128, 128
          %960 = vsyncadd %s941, %s959
          %s961 = smul.addr %s28, 128
          %s962 = scalar_lea.hbm %s4, %s961
          %s964 = sshll.u32 %s944, 4
          %s965 = int_to_ptr.vmem [resolvable:$true] %s964
          %967 = dma.vmem_to_hbm [thread:$0]  %s965, 128, %s962, %s941
        $region52: #{tpu_custom_call.1} parent=35 // pred_fallthru
          _
        // Predicated region
        $region53: #{tpu_custom_call.1} parent=35 // pred_check
          %p968 = pneg %p161
        $region54: #{tpu_custom_call.1} parent=35 // pred_check_branch
          %970 = sbr.rel (%p968) target = $region56
        $region55: #{tpu_custom_call.1} parent=35 // pred_region
          %s972 = ssub.s32 192, 192
          %973 = vsyncadd %s946, %s972
          %s974 = smul.addr %s28, 3
          %s975 = smul.addr %s974, 64
          %s976 = scalar_lea.hbm %s5, %s975
          %s977 = sshll.u32 %s949, 4
          %s978 = int_to_ptr.vmem [resolvable:$true] %s977
          %983 = dma.vmem_to_hbm [thread:$0]  %s978, 192, %s976, %s946, 64, 64, 4
        $region56: #{tpu_custom_call.1} parent=35 // pred_fallthru
          _
        // Predicated region
        $region57: #{tpu_custom_call.1} parent=35 // pred_check
          %p984 = pneg %p187
        $region58: #{tpu_custom_call.1} parent=35 // pred_check_branch
          %986 = sbr.rel (%p984) target = $region60
        $region59: #{tpu_custom_call.1} parent=35 // pred_region
          %s988 = ssub.s32 192, 192
          %989 = vsyncadd %s951, %s988
          %s990 = smul.addr %s28, 3
          %s991 = smul.addr %s990, 64
          %s992 = scalar_lea.hbm %s6, %s991
          %s993 = sshll.u32 %s954, 4
          %s994 = int_to_ptr.vmem [resolvable:$true] %s993
          %999 = dma.vmem_to_hbm [thread:$0]  %s994, 192, %s992, %s951, 64, 64, 4
        $region60: #{tpu_custom_call.1} parent=35 // pred_fallthru
          _
      $region36: #{tpu_custom_call.1} parent=5 // pred_fallthru
        _
      %p1000 = scmp.le.s32.totalorder 2, %s23
      // Predicated region
      $region61: #{tpu_custom_call.1} parent=5 // pred_check
        %p1001 = pneg %p1000
      $region62: #{tpu_custom_call.1} parent=5 // pred_check_branch
        %1003 = sbr.rel (%p1001) target = $region64
      $region63: #{tpu_custom_call.1} parent=5 // pred_region
        %s1004 = ssub.s32 %s23, 2
        // Predicated region
        $region65: #{tpu_custom_call.1} parent=63 // pred_check
          %p1005 = pneg %p141
        $region66: #{tpu_custom_call.1} parent=63 // pred_check_branch
          %1007 = sbr.rel (%p1005) target = $region68
        $region67: #{tpu_custom_call.1} parent=63 // pred_region
          %s1008 = sand.u32 %s126, 1
          %s1009 = scalar_lea.sflag [#allocation5], %s1008
          %s1010 = sand.u32 %s126, 1
          %s1011 = smul.addr %s1010, 8
          %s1012 = scalar_lea.vmem [#allocation9], %s1011
          %1013 = dma.done %s1009, 128
        $region68: #{tpu_custom_call.1} parent=63 // pred_fallthru
          _
        // Predicated region
        $region69: #{tpu_custom_call.1} parent=63 // pred_check
          %p1014 = pneg %p167
        $region70: #{tpu_custom_call.1} parent=63 // pred_check_branch
          %1016 = sbr.rel (%p1014) target = $region72
        $region71: #{tpu_custom_call.1} parent=63 // pred_region
          %s1017 = sand.u32 %s29, 1
          %s1018 = scalar_lea.sflag [#allocation11], %s1017
          %s1019 = sand.u32 %s152, 1
          %s1020 = smul.addr %s1019, 12
          %s1021 = scalar_lea.vmem [#allocation10], %s1020
          %1022 = dma.done %s1018, 192
        $region72: #{tpu_custom_call.1} parent=63 // pred_fallthru
          _
        // Predicated region
        $region73: #{tpu_custom_call.1} parent=63 // pred_check
          %p1023 = pneg %p193
        $region74: #{tpu_custom_call.1} parent=63 // pred_check_branch
          %1025 = sbr.rel (%p1023) target = $region76
        $region75: #{tpu_custom_call.1} parent=63 // pred_region
          %s1026 = sand.u32 %s29, 1
          %s1027 = scalar_lea.sflag [#allocation11], %s1026
          %s1028 = sand.u32 %s178, 1
          %s1029 = smul.addr %s1028, 12
          %s1030 = scalar_lea.vmem [#allocation12], %s1029
          %1031 = dma.done %s1027, 192
        $region76: #{tpu_custom_call.1} parent=63 // pred_fallthru
          _
      $region64: #{tpu_custom_call.1} parent=5 // pred_fallthru
        _
    $region6: #{tpu_custom_call.1} parent=1 // loop_footer
      %s27 = sadd.s32 1, %s23
    $region7: #{tpu_custom_call.1} parent=1 // loop_footer_branch
      %22 = sbr.rel target = $region3
    $region8: #{tpu_custom_call.1} parent=1 // loop_exit
      _
    %1032 = vsyncpa [#allocation4], 1
    %s1033 = scalar_lea.sflag [#allocation4], 1
    %1034 = vsyncpa %s1033, 1
    %1035 = vsyncpa [#allocation7], 1
    %1036 = vsyncpa [#allocation5], 1
    %s1037 = scalar_lea.sflag [#allocation5], 1
    %1038 = vsyncpa %s1037, 1
    %1039 = vsyncpa [#allocation11], 1
    %s1040 = scalar_lea.sflag [#allocation11], 1
    %1041 = vsyncpa %s1040, 1

</llo_original>
